<compile_context>
chip_gen: v7x
topology: tpu7x:2x2x1
jax: 0.10.0
libtpu: 0.0.40
codegen_flags: <defaults>
</compile_context>

<pallas_src>
import functools

import jax
import jax.numpy as jnp
from jax import lax
from jax.experimental import pallas as pl
from jax.experimental.pallas import tpu as pltpu


# ----------------------------- shared math -----------------------------------
def _layer_norm(x, gamma, beta, eps=1e-5):
    mean = jnp.mean(x, axis=-1, keepdims=True)
    var = jnp.mean(jnp.square(x - mean), axis=-1, keepdims=True)
    return (x - mean) * lax.rsqrt(var + eps) * gamma + beta


def _vmem_limit_bytes(tensors, extra_bytes=0):
    """Scoped-VMEM request sized from the actual buffers (clamped for v7x)."""
    total = sum(int(t.size) * t.dtype.itemsize for t in tensors) + extra_bytes
    # 2x covers the pipeline's double-buffered copies; keep the request above
    # the 16/32 MiB default scoped limit but below v7x's 64 MiB physical VMEM.
    return int(min(48 * 2**20, max(32 * 2**20, 2 * total)))


# ------------------ Kernel 1: self-attention + residual + norm1 --------------
# Gridded over batch; each grid step sees a lane-dense (S, D) slab.
def mha_norm_kernel(x_ref, wqkv_ref, bqkv_ref, wo_ref, bo_ref, g1_ref, be1_ref,
                    out_ref, *, nhead):
    S, D = x_ref.shape
    hd = D // nhead
    mxu = wqkv_ref.dtype                      # bf16 MXU operands, f32 accumulate

    x = x_ref[...]                            # (S, D) f32
    qkv = jnp.dot(x.astype(mxu), wqkv_ref[...],
                  preferred_element_type=jnp.float32) + bqkv_ref[...]
    scale = 1.0 / (hd ** 0.5)

    ctx = []
    for h in range(nhead):                    # static unroll over heads
        q = (qkv[:, h * hd:(h + 1) * hd] * scale).astype(mxu)
        k = qkv[:, D + h * hd:D + (h + 1) * hd].astype(mxu)
        v = qkv[:, 2 * D + h * hd:2 * D + (h + 1) * hd].astype(mxu)
        # q @ k^T via dot_general contraction flags -- no materialized transpose.
        s = lax.dot_general(q, k, (((1,), (1,)), ((), ())),
                            preferred_element_type=jnp.float32)      # (S, S)
        m = jnp.max(s, axis=-1, keepdims=True)
        e = jnp.exp(s - m)
        p = e * pl.reciprocal(jnp.sum(e, axis=-1, keepdims=True), approx=True)
        ctx.append(jnp.dot(p.astype(mxu), v, preferred_element_type=jnp.float32))
    attn = jnp.concatenate(ctx, axis=-1)      # (S, D)

    proj = jnp.dot(attn.astype(mxu), wo_ref[...],
                   preferred_element_type=jnp.float32) + bo_ref[...]
    # residual (dropout1 is identity at p=0) + "instant" layer norm
    out_ref[...] = _layer_norm(x + proj, g1_ref[...], be1_ref[...])


def mha_norm_call(x_bm, q, nhead):
    B, S, D = x_bm.shape

    def fullspec(a):
        return pl.BlockSpec(a.shape, lambda b: (0, 0))   # resident across grid

    args = (x_bm, q['wqkv_t'], q['bqkv'], q['wo_t'], q['bo'],
            q['norm1_g'], q['norm1_b'])
    in_specs = [pl.BlockSpec((None, S, D), lambda b: (b, 0, 0))]
    in_specs += [fullspec(a) for a in args[1:]]

    return pl.pallas_call(
        functools.partial(mha_norm_kernel, nhead=nhead),
        grid=(B,),
        out_shape=jax.ShapeDtypeStruct((B, S, D), jnp.float32),
        in_specs=in_specs,
        out_specs=pl.BlockSpec((None, S, D), lambda b: (b, 0, 0)),
        compiler_params=pltpu.CompilerParams(
            dimension_semantics=("parallel",),
            vmem_limit_bytes=_vmem_limit_bytes(list(args) + [x_bm])),
    )(*args)


# ----------- Kernel 2: BiGRU + relu + linear2 + residual + norm2 --------------
def gru_ffn_kernel(src_ref,
                   wih_f_ref, whh_f_ref, bih_f_ref, bhh_f_ref,
                   wih_b_ref, whh_b_ref, bih_b_ref, bhh_b_ref,
                   w2f_ref, w2b_ref, b2_ref, g2_ref, be2_ref,
                   out_ref,
                   gi_f_scr, gi_b_scr, hf_scr, hb_scr):
    S, B, D = src_ref.shape
    H = whh_f_ref.shape[0]                    # whh_t: (H, 3H)
    mxu = wih_f_ref.dtype

    x2 = src_ref[...].reshape(S * B, D)
    xb = x2.astype(mxu)

    # Input projections for both directions as two big MXU matmuls.
    gi_f_scr[...] = (jnp.dot(xb, wih_f_ref[...], preferred_element_type=jnp.float32)
                     + bih_f_ref[...]).reshape(S, B, 3 * H)
    gi_b_scr[...] = (jnp.dot(xb, wih_b_ref[...], preferred_element_type=jnp.float32)
                     + bih_b_ref[...]).reshape(S, B, 3 * H)

    # Recurrent weights/biases loaded once (already transposed on the host).
    whh_f = whh_f_ref[...]
    whh_b = whh_b_ref[...]
    bhh_f = bhh_f_ref[...]
    bhh_b = bhh_b_ref[...]

    def cell(gi, h, whh_t, bhh):
        # PyTorch GRU gate order (r, z, n); b_hn stays inside the r product.
        gh = jnp.dot(h.astype(mxu), whh_t, preferred_element_type=jnp.float32) + bhh
        r = jax.nn.sigmoid(gi[:, 0:H] + gh[:, 0:H])
        z = jax.nn.sigmoid(gi[:, H:2 * H] + gh[:, H:2 * H])
        n = jnp.tanh(gi[:, 2 * H:3 * H] + r * gh[:, 2 * H:3 * H])
        return (1.0 - z) * n + z * h

    def step(i, carry):
        h_f, h_b = carry
        t_b = S - 1 - i
        # Two independent recurrences per iteration -> ~2x ILP on the serial path.
        h_f = cell(gi_f_scr[i], h_f, whh_f, bhh_f)
        h_b = cell(gi_b_scr[t_b], h_b, whh_b, bhh_b)
        hf_scr[i] = h_f
        hb_scr[t_b] = h_b
        return (h_f, h_b)

    h0 = jnp.zeros((B, H), jnp.float32)
    lax.fori_loop(0, S, step, (h0, h0))

    # Fused FFN epilogue: relu + linear2 split per direction (no concat, no
    # (S,B,2H) HBM round trip) + residual + norm2.  Dropout layers are identity.
    rf = jnp.maximum(hf_scr[...].reshape(S * B, H), 0.0).astype(mxu)
    rb = jnp.maximum(hb_scr[...].reshape(S * B, H), 0.0).astype(mxu)
    src2 = (jnp.dot(rf, w2f_ref[...], preferred_element_type=jnp.float32)
            + jnp.dot(rb, w2b_ref[...], preferred_element_type=jnp.float32)
            + b2_ref[...])
    y = _layer_norm(x2 + src2, g2_ref[...], be2_ref[...])
    out_ref[...] = y.reshape(S, B, D)


def gru_ffn_call(src, q):
    S, B, D = src.shape
    H = q['whh_f_t'].shape[0]
    args = (src, q['wih_f_t'], q['whh_f_t'], q['bih_f'], q['bhh_f'],
            q['wih_b_t'], q['whh_b_t'], q['bih_b'], q['bhh_b'],
            q['w2f_t'], q['w2b_t'], q['b2'], q['norm2_g'], q['norm2_b'])
    scratch_bytes = (2 * S * B * 3 * H + 2 * S * B * H) * 4
    return pl.pallas_call(
        gru_ffn_kernel,
        out_shape=jax.ShapeDtypeStruct((S, B, D), jnp.float32),
        in_specs=[pl.BlockSpec(memory_space=pltpu.MemorySpace.VMEM)] * len(args),
        out_specs=pl.BlockSpec(memory_space=pltpu.MemorySpace.VMEM),
        scratch_shapes=[
            pltpu.VMEM((S, B, 3 * H), jnp.float32),
            pltpu.VMEM((S, B, 3 * H), jnp.float32),
            pltpu.VMEM((S, B, H), jnp.float32),
            pltpu.VMEM((S, B, H), jnp.float32),
        ],
        input_output_aliases={0: 0},          # reuse src's HBM buffer for output
        compiler_params=pltpu.CompilerParams(
            vmem_limit_bytes=_vmem_limit_bytes(list(args) + [src], scratch_bytes)),
    )(*args)


# ------------------------------ module wrapper --------------------------------
def transformer_encoder_layer(x, qp, nhead):
    S, B, D = x.shape
    assert D % nhead == 0
    # MHA runs batch-major so it can be gridded over B with lane-dense (S, D)
    # blocks and zero in-kernel activation transposes; the GRU runs time-major.
    x_bm = jnp.transpose(x, (1, 0, 2))                   # (B, S, D)
    src_bm = mha_norm_call(x_bm, qp, nhead)              # (B, S, D)
    src = jnp.transpose(src_bm, (1, 0, 2))               # (S, B, D)
    return gru_ffn_call(src, qp)


# ---------------------- parameter init / host-side prep -----------------------
def init_params(key, d_model):
    D = d_model
    H = 2 * D   # GRU hidden per direction
    keys = jax.random.split(key, 14)

    def u(k, shape, fan_in):
        bound = 1.0 / (fan_in ** 0.5)
        return jax.random.uniform(k, shape, jnp.float32, -bound, bound)

    return {
        'in_proj_w':  u(keys[0], (3 * D, D), D),
        'in_proj_b':  u(keys[1], (3 * D,), D),
        'out_proj_w': u(keys[2], (D, D), D),
        'out_proj_b': u(keys[3], (D,), D),
        'norm1_g':    jnp.ones((D,), jnp.float32),
        'norm1_b':    jnp.zeros((D,), jnp.float32),
        'gru_wih_f':  u(keys[4], (3 * H, D), H),
        'gru_whh_f':  u(keys[5], (3 * H, H), H),
        'gru_bih_f':  u(keys[6], (3 * H,), H),
        'gru_bhh_f':  u(keys[7], (3 * H,), H),
        'gru_wih_b':  u(keys[8], (3 * H, D), H),
        'gru_whh_b':  u(keys[9], (3 * H, H), H),
        'gru_bih_b':  u(keys[10], (3 * H,), H),
        'gru_bhh_b':  u(keys[11], (3 * H,), H),
        'lin2_w':     u(keys[12], (D, 2 * H), 2 * H),
        'lin2_b':     u(keys[13], (D,), 2 * H),
        'norm2_g':    jnp.ones((D,), jnp.float32),
        'norm2_b':    jnp.zeros((D,), jnp.float32),
    }


def prepare_params(p, matmul_dtype=jnp.bfloat16):
    """One-time host-side prep: transpose to (in, out), cast MXU operands to
    bf16, keep biases/norm params in f32 as 2-D rows."""
    H = p['gru_whh_f'].shape[1]

    def wt(w):
        return jnp.asarray(w.T, dtype=matmul_dtype)

    def row(b):
        return jnp.asarray(b, jnp.float32).reshape(1, -1)

    w2_t = p['lin2_w'].T                                  # (2H, D)
    return {
        'wqkv_t': wt(p['in_proj_w']),                     # (D, 3D)
        'bqkv':   row(p['in_proj_b']),
        'wo_t':   wt(p['out_proj_w']),                    # (D, D)
        'bo':     row(p['out_proj_b']),
        'norm1_g': row(p['norm1_g']), 'norm1_b': row(p['norm1_b']),
        'wih_f_t': wt(p['gru_wih_f']), 'whh_f_t': wt(p['gru_whh_f']),
        'bih_f':   row(p['gru_bih_f']), 'bhh_f': row(p['gru_bhh_f']),
        'wih_b_t': wt(p['gru_wih_b']), 'whh_b_t': wt(p['gru_whh_b']),
        'bih_b':   row(p['gru_bih_b']), 'bhh_b': row(p['gru_bhh_b']),
        'w2f_t':   jnp.asarray(w2_t[:H], matmul_dtype),   # (H, D) fwd half
        'w2b_t':   jnp.asarray(w2_t[H:], matmul_dtype),   # (H, D) bwd half
        'b2':      row(p['lin2_b']),
        'norm2_g': row(p['norm2_g']), 'norm2_b': row(p['norm2_b']),
    }


# --------------------------- pure-JAX reference -------------------------------
def reference_forward(x, p, nhead, matmul_dtype=jnp.float32):
    """matmul_dtype mirrors the kernels' MXU operand precision (f32 accumulate)."""
    S, B, D = x.shape
    hd = D // nhead
    H = p['gru_whh_f'].shape[1]
    md = matmul_dtype

    def mm(a, w):    # a @ w.T with the kernel's MXU operand dtype, f32 accumulate
        return jnp.dot(a.astype(md), w.T.astype(md),
                       preferred_element_type=jnp.float32)

    x2 = x.reshape(S * B, D)
    qkv = mm(x2, p['in_proj_w']) + p['in_proj_b']
    scale = 1.0 / (hd ** 0.5)
    q = (qkv[:, :D] * scale).reshape(S, B * nhead, hd).transpose(1, 0, 2)
    k = qkv[:, D:2 * D].reshape(S, B * nhead, hd).transpose(1, 0, 2)
    v = qkv[:, 2 * D:].reshape(S, B * nhead, hd).transpose(1, 0, 2)
    scores = jnp.einsum('zsd,ztd->zst', q.astype(md), k.astype(md),
                        preferred_element_type=jnp.float32)
    probs = jax.nn.softmax(scores, axis=-1)
    ctx = jnp.einsum('zst,ztd->zsd', probs.astype(md), v.astype(md),
                     preferred_element_type=jnp.float32)
    attn = ctx.transpose(1, 0, 2).reshape(S * B, D)
    proj = mm(attn, p['out_proj_w']) + p['out_proj_b']
    src = _layer_norm(x2 + proj, p['norm1_g'], p['norm1_b'])

    gi_f = (mm(src, p['gru_wih_f']) + p['gru_bih_f']).reshape(S, B, 3 * H)
    gi_b = (mm(src, p['gru_wih_b']) + p['gru_bih_b']).reshape(S, B, 3 * H)

    def cell(h, gi, whh, bhh):
        gh = mm(h, whh) + bhh
        r = jax.nn.sigmoid(gi[:, :H] + gh[:, :H])
        z = jax.nn.sigmoid(gi[:, H:2 * H] + gh[:, H:2 * H])
        n = jnp.tanh(gi[:, 2 * H:] + r * gh[:, 2 * H:])
        return (1.0 - z) * n + z * h

    h0 = jnp.zeros((B, H), jnp.float32)
    _, out_f = lax.scan(lambda h, gi: (cell(h, gi, p['gru_whh_f'], p['gru_bhh_f']),) * 2,
                        h0, gi_f)
    _, out_b = lax.scan(lambda h, gi: (cell(h, gi, p['gru_whh_b'], p['gru_bhh_b']),) * 2,
                        h0, gi_b[::-1])
    out_b = out_b[::-1]

    rf = jnp.maximum(out_f.reshape(S * B, H), 0.0)
    rb = jnp.maximum(out_b.reshape(S * B, H), 0.0)
    w2 = p['lin2_w']                                      # (D, 2H)
    src2 = mm(rf, w2[:, :H]) + mm(rb, w2[:, H:]) + p['lin2_b']
    out = _layer_norm(src + src2, p['norm2_g'], p['norm2_b'])
    return out.reshape(S, B, D)


# ------------------------------------ main -------------------------------------
if __name__ == "__main__":
    S, B, D, NHEAD = 8, 2, 32, 4
    key = jax.random.PRNGKey(0)
    kx, kp = jax.random.split(key)
    x = jax.random.normal(kx, (S, B, D), jnp.float32)
    params = init_params(kp, D)
    qparams = prepare_params(params, matmul_dtype=jnp.bfloat16)

    fwd = jax.jit(transformer_encoder_layer, static_argnames=("nhead",))
    out = fwd(x, qparams, nhead=NHEAD)
    out = jax.block_until_ready(out)

    assert out.shape == (S, B, D)
    assert bool(jnp.all(jnp.isfinite(out)))

    # Same mixed-precision policy as the kernels (bf16 MXU operands, f32 acc);
    # tolerance absorbs the approx-reciprocal softmax denominator.
    ref_mixed = reference_forward(x, params, NHEAD, matmul_dtype=jnp.bfloat16)
    err_mixed = float(jnp.max(jnp.abs(out - ref_mixed)))
    assert err_mixed < 2e-2, f"mixed-precision mismatch: {err_mixed}"

    # Sanity vs. the full-fp32 PyTorch-equivalent math (bf16 operand rounding).
    ref_fp32 = reference_forward(x, params, NHEAD, matmul_dtype=jnp.float32)
    err_fp32 = float(jnp.max(jnp.abs(out - ref_fp32)))
    assert err_fp32 < 5e-2, f"fp32-reference mismatch: {err_fp32}"

    print("KERNEL_OK")
</pallas_src>

<mosaic_0001>
module attributes {stable_mosaic.version = 11 : i64} {
  func.func @mha_norm_kernel(%arg0: i32, %arg1: memref<1x8x32xf32, #tpu.memory_space<vmem>>, %arg2: memref<32x96xbf16, #tpu.memory_space<vmem>>, %arg3: memref<1x96xf32, #tpu.memory_space<vmem>>, %arg4: memref<32x32xbf16, #tpu.memory_space<vmem>>, %arg5: memref<1x32xf32, #tpu.memory_space<vmem>>, %arg6: memref<1x32xf32, #tpu.memory_space<vmem>>, %arg7: memref<1x32xf32, #tpu.memory_space<vmem>>, %arg8: memref<1x8x32xf32, #tpu.memory_space<vmem>>) attributes {dimension_semantics = [#tpu.dimension_semantics<parallel>], iteration_bounds = array<i64: 2>, scalar_prefetch = 0 : i64, scratch_operands = 0 : i64, tpu.core_type = #tpu.core_type<tc>, window_params = [{transform_indices = @transform_0, window_bounds = array<i64: 1, 8, 32>}, {pipeline_mode = #tpu.pipeline_mode<synchronous>, transform_indices = @transform_1, window_bounds = array<i64: 32, 96>}, {pipeline_mode = #tpu.pipeline_mode<synchronous>, transform_indices = @transform_2, window_bounds = array<i64: 1, 96>}, {pipeline_mode = #tpu.pipeline_mode<synchronous>, transform_indices = @transform_3, window_bounds = array<i64: 32, 32>}, {pipeline_mode = #tpu.pipeline_mode<synchronous>, transform_indices = @transform_4, window_bounds = array<i64: 1, 32>}, {pipeline_mode = #tpu.pipeline_mode<synchronous>, transform_indices = @transform_5, window_bounds = array<i64: 1, 32>}, {pipeline_mode = #tpu.pipeline_mode<synchronous>, transform_indices = @transform_6, window_bounds = array<i64: 1, 32>}, {transform_indices = @transform_7, window_bounds = array<i64: 1, 8, 32>}]} {
    %c0 = arith.constant 0 : index
    %c0_0 = arith.constant 0 : index
    %c0_1 = arith.constant 0 : index
    %0 = vector.load %arg1[%c0, %c0_0, %c0_1] : memref<1x8x32xf32, #tpu.memory_space<vmem>>, vector<1x8x32xf32>
    %1 = vector.shape_cast %0 : vector<1x8x32xf32> to vector<8x32xf32>
    %2 = arith.truncf %1 : vector<8x32xf32> to vector<8x32xbf16>
    %c0_2 = arith.constant 0 : index
    %c0_3 = arith.constant 0 : index
    %3 = vector.load %arg2[%c0_2, %c0_3] : memref<32x96xbf16, #tpu.memory_space<vmem>>, vector<32x96xbf16>
    %cst = arith.constant dense<0.000000e+00> : vector<8x96xf32>
    %4 = tpu.matmul %2, %3, %cst {dimension_numbers = #tpu.dot_dimension_numbers<[1], [0], [0], [1], [0, 0, 1, 1], [], []>} : vector<8x32xbf16>, vector<32x96xbf16>, vector<8x96xf32> -> vector<8x96xf32>
    %c0_4 = arith.constant 0 : index
    %c0_5 = arith.constant 0 : index
    %5 = vector.load %arg3[%c0_4, %c0_5] : memref<1x96xf32, #tpu.memory_space<vmem>>, vector<1x96xf32>
    %6 = vector.broadcast %5 : vector<1x96xf32> to vector<8x96xf32>
    %7 = arith.addf %4, %6 : vector<8x96xf32>
    %8 = vector.extract_strided_slice %7 {offsets = [0, 0], sizes = [8, 8], strides = [1, 1]} : vector<8x96xf32> to vector<8x8xf32>
    %cst_6 = arith.constant 0.353553385 : f32
    %9 = vector.broadcast %cst_6 : f32 to vector<8x8xf32>
    %10 = arith.mulf %8, %9 : vector<8x8xf32>
    %11 = arith.truncf %10 : vector<8x8xf32> to vector<8x8xbf16>
    %12 = vector.extract_strided_slice %7 {offsets = [0, 32], sizes = [8, 8], strides = [1, 1]} : vector<8x96xf32> to vector<8x8xf32>
    %13 = arith.truncf %12 : vector<8x8xf32> to vector<8x8xbf16>
    %14 = vector.extract_strided_slice %7 {offsets = [0, 64], sizes = [8, 8], strides = [1, 1]} : vector<8x96xf32> to vector<8x8xf32>
    %15 = arith.truncf %14 : vector<8x8xf32> to vector<8x8xbf16>
    %cst_7 = arith.constant dense<0.000000e+00> : vector<8x8xf32>
    %16 = tpu.matmul %11, %13, %cst_7 {dimension_numbers = #tpu.dot_dimension_numbers<[1], [1], [0], [0], [0, 0, 1, 0], [], []>} : vector<8x8xbf16>, vector<8x8xbf16>, vector<8x8xf32> -> vector<8x8xf32>
    %cst_8 = arith.constant dense<0xFF800000> : vector<8xf32>
    %17 = vector.multi_reduction <maximumf>, %16, %cst_8 [1] : vector<8x8xf32> to vector<8xf32>
    %18 = vector.shape_cast %17 : vector<8xf32> to vector<8x1xf32>
    %19 = vector.broadcast %18 : vector<8x1xf32> to vector<8x8xf32>
    %20 = arith.subf %16, %19 : vector<8x8xf32>
    %21 = math.exp %20 : vector<8x8xf32>
    %cst_9 = arith.constant dense<0.000000e+00> : vector<8xf32>
    %22 = vector.multi_reduction <add>, %21, %cst_9 [1] : vector<8x8xf32> to vector<8xf32>
    %23 = vector.shape_cast %22 : vector<8xf32> to vector<8x1xf32>
    %24 = tpu.reciprocal %23 {approx = true} : vector<8x1xf32> -> vector<8x1xf32>
    %25 = vector.broadcast %24 : vector<8x1xf32> to vector<8x8xf32>
    %26 = arith.mulf %21, %25 : vector<8x8xf32>
    %27 = arith.truncf %26 : vector<8x8xf32> to vector<8x8xbf16>
    %cst_10 = arith.constant dense<0.000000e+00> : vector<8x8xf32>
    %28 = tpu.matmul %27, %15, %cst_10 {dimension_numbers = #tpu.dot_dimension_numbers<[1], [0], [0], [1], [0, 0, 1, 1], [], []>} : vector<8x8xbf16>, vector<8x8xbf16>, vector<8x8xf32> -> vector<8x8xf32>
    %29 = vector.extract_strided_slice %7 {offsets = [0, 8], sizes = [8, 8], strides = [1, 1]} : vector<8x96xf32> to vector<8x8xf32>
    %cst_11 = arith.constant 0.353553385 : f32
    %30 = vector.broadcast %cst_11 : f32 to vector<8x8xf32>
    %31 = arith.mulf %29, %30 : vector<8x8xf32>
    %32 = arith.truncf %31 : vector<8x8xf32> to vector<8x8xbf16>
    %33 = vector.extract_strided_slice %7 {offsets = [0, 40], sizes = [8, 8], strides = [1, 1]} : vector<8x96xf32> to vector<8x8xf32>
    %34 = arith.truncf %33 : vector<8x8xf32> to vector<8x8xbf16>
    %35 = vector.extract_strided_slice %7 {offsets = [0, 72], sizes = [8, 8], strides = [1, 1]} : vector<8x96xf32> to vector<8x8xf32>
    %36 = arith.truncf %35 : vector<8x8xf32> to vector<8x8xbf16>
    %cst_12 = arith.constant dense<0.000000e+00> : vector<8x8xf32>
    %37 = tpu.matmul %32, %34, %cst_12 {dimension_numbers = #tpu.dot_dimension_numbers<[1], [1], [0], [0], [0, 0, 1, 0], [], []>} : vector<8x8xbf16>, vector<8x8xbf16>, vector<8x8xf32> -> vector<8x8xf32>
    %cst_13 = arith.constant dense<0xFF800000> : vector<8xf32>
    %38 = vector.multi_reduction <maximumf>, %37, %cst_13 [1] : vector<8x8xf32> to vector<8xf32>
    %39 = vector.shape_cast %38 : vector<8xf32> to vector<8x1xf32>
    %40 = vector.broadcast %39 : vector<8x1xf32> to vector<8x8xf32>
    %41 = arith.subf %37, %40 : vector<8x8xf32>
    %42 = math.exp %41 : vector<8x8xf32>
    %cst_14 = arith.constant dense<0.000000e+00> : vector<8xf32>
    %43 = vector.multi_reduction <add>, %42, %cst_14 [1] : vector<8x8xf32> to vector<8xf32>
    %44 = vector.shape_cast %43 : vector<8xf32> to vector<8x1xf32>
    %45 = tpu.reciprocal %44 {approx = true} : vector<8x1xf32> -> vector<8x1xf32>
    %46 = vector.broadcast %45 : vector<8x1xf32> to vector<8x8xf32>
    %47 = arith.mulf %42, %46 : vector<8x8xf32>
    %48 = arith.truncf %47 : vector<8x8xf32> to vector<8x8xbf16>
    %cst_15 = arith.constant dense<0.000000e+00> : vector<8x8xf32>
    %49 = tpu.matmul %48, %36, %cst_15 {dimension_numbers = #tpu.dot_dimension_numbers<[1], [0], [0], [1], [0, 0, 1, 1], [], []>} : vector<8x8xbf16>, vector<8x8xbf16>, vector<8x8xf32> -> vector<8x8xf32>
    %50 = vector.extract_strided_slice %7 {offsets = [0, 16], sizes = [8, 8], strides = [1, 1]} : vector<8x96xf32> to vector<8x8xf32>
    %cst_16 = arith.constant 0.353553385 : f32
    %51 = vector.broadcast %cst_16 : f32 to vector<8x8xf32>
    %52 = arith.mulf %50, %51 : vector<8x8xf32>
    %53 = arith.truncf %52 : vector<8x8xf32> to vector<8x8xbf16>
    %54 = vector.extract_strided_slice %7 {offsets = [0, 48], sizes = [8, 8], strides = [1, 1]} : vector<8x96xf32> to vector<8x8xf32>
    %55 = arith.truncf %54 : vector<8x8xf32> to vector<8x8xbf16>
    %56 = vector.extract_strided_slice %7 {offsets = [0, 80], sizes = [8, 8], strides = [1, 1]} : vector<8x96xf32> to vector<8x8xf32>
    %57 = arith.truncf %56 : vector<8x8xf32> to vector<8x8xbf16>
    %cst_17 = arith.constant dense<0.000000e+00> : vector<8x8xf32>
    %58 = tpu.matmul %53, %55, %cst_17 {dimension_numbers = #tpu.dot_dimension_numbers<[1], [1], [0], [0], [0, 0, 1, 0], [], []>} : vector<8x8xbf16>, vector<8x8xbf16>, vector<8x8xf32> -> vector<8x8xf32>
    %cst_18 = arith.constant dense<0xFF800000> : vector<8xf32>
    %59 = vector.multi_reduction <maximumf>, %58, %cst_18 [1] : vector<8x8xf32> to vector<8xf32>
    %60 = vector.shape_cast %59 : vector<8xf32> to vector<8x1xf32>
    %61 = vector.broadcast %60 : vector<8x1xf32> to vector<8x8xf32>
    %62 = arith.subf %58, %61 : vector<8x8xf32>
    %63 = math.exp %62 : vector<8x8xf32>
    %cst_19 = arith.constant dense<0.000000e+00> : vector<8xf32>
    %64 = vector.multi_reduction <add>, %63, %cst_19 [1] : vector<8x8xf32> to vector<8xf32>
    %65 = vector.shape_cast %64 : vector<8xf32> to vector<8x1xf32>
    %66 = tpu.reciprocal %65 {approx = true} : vector<8x1xf32> -> vector<8x1xf32>
    %67 = vector.broadcast %66 : vector<8x1xf32> to vector<8x8xf32>
    %68 = arith.mulf %63, %67 : vector<8x8xf32>
    %69 = arith.truncf %68 : vector<8x8xf32> to vector<8x8xbf16>
    %cst_20 = arith.constant dense<0.000000e+00> : vector<8x8xf32>
    %70 = tpu.matmul %69, %57, %cst_20 {dimension_numbers = #tpu.dot_dimension_numbers<[1], [0], [0], [1], [0, 0, 1, 1], [], []>} : vector<8x8xbf16>, vector<8x8xbf16>, vector<8x8xf32> -> vector<8x8xf32>
    %71 = vector.extract_strided_slice %7 {offsets = [0, 24], sizes = [8, 8], strides = [1, 1]} : vector<8x96xf32> to vector<8x8xf32>
    %cst_21 = arith.constant 0.353553385 : f32
    %72 = vector.broadcast %cst_21 : f32 to vector<8x8xf32>
    %73 = arith.mulf %71, %72 : vector<8x8xf32>
    %74 = arith.truncf %73 : vector<8x8xf32> to vector<8x8xbf16>
    %75 = vector.extract_strided_slice %7 {offsets = [0, 56], sizes = [8, 8], strides = [1, 1]} : vector<8x96xf32> to vector<8x8xf32>
    %76 = arith.truncf %75 : vector<8x8xf32> to vector<8x8xbf16>
    %77 = vector.extract_strided_slice %7 {offsets = [0, 88], sizes = [8, 8], strides = [1, 1]} : vector<8x96xf32> to vector<8x8xf32>
    %78 = arith.truncf %77 : vector<8x8xf32> to vector<8x8xbf16>
    %cst_22 = arith.constant dense<0.000000e+00> : vector<8x8xf32>
    %79 = tpu.matmul %74, %76, %cst_22 {dimension_numbers = #tpu.dot_dimension_numbers<[1], [1], [0], [0], [0, 0, 1, 0], [], []>} : vector<8x8xbf16>, vector<8x8xbf16>, vector<8x8xf32> -> vector<8x8xf32>
    %cst_23 = arith.constant dense<0xFF800000> : vector<8xf32>
    %80 = vector.multi_reduction <maximumf>, %79, %cst_23 [1] : vector<8x8xf32> to vector<8xf32>
    %81 = vector.shape_cast %80 : vector<8xf32> to vector<8x1xf32>
    %82 = vector.broadcast %81 : vector<8x1xf32> to vector<8x8xf32>
    %83 = arith.subf %79, %82 : vector<8x8xf32>
    %84 = math.exp %83 : vector<8x8xf32>
    %cst_24 = arith.constant dense<0.000000e+00> : vector<8xf32>
    %85 = vector.multi_reduction <add>, %84, %cst_24 [1] : vector<8x8xf32> to vector<8xf32>
    %86 = vector.shape_cast %85 : vector<8xf32> to vector<8x1xf32>
    %87 = tpu.reciprocal %86 {approx = true} : vector<8x1xf32> -> vector<8x1xf32>
    %88 = vector.broadcast %87 : vector<8x1xf32> to vector<8x8xf32>
    %89 = arith.mulf %84, %88 : vector<8x8xf32>
    %90 = arith.truncf %89 : vector<8x8xf32> to vector<8x8xbf16>
    %cst_25 = arith.constant dense<0.000000e+00> : vector<8x8xf32>
    %91 = tpu.matmul %90, %78, %cst_25 {dimension_numbers = #tpu.dot_dimension_numbers<[1], [0], [0], [1], [0, 0, 1, 1], [], []>} : vector<8x8xbf16>, vector<8x8xbf16>, vector<8x8xf32> -> vector<8x8xf32>
    %92 = tpu.concatenate %28, %49, %70, %91 in 1 : vector<8x8xf32>, vector<8x8xf32>, vector<8x8xf32>, vector<8x8xf32> -> vector<8x32xf32>
    %93 = arith.truncf %92 : vector<8x32xf32> to vector<8x32xbf16>
    %c0_26 = arith.constant 0 : index
    %c0_27 = arith.constant 0 : index
    %94 = vector.load %arg4[%c0_26, %c0_27] : memref<32x32xbf16, #tpu.memory_space<vmem>>, vector<32x32xbf16>
    %cst_28 = arith.constant dense<0.000000e+00> : vector<8x32xf32>
    %95 = tpu.matmul %93, %94, %cst_28 {dimension_numbers = #tpu.dot_dimension_numbers<[1], [0], [0], [1], [0, 0, 1, 1], [], []>} : vector<8x32xbf16>, vector<32x32xbf16>, vector<8x32xf32> -> vector<8x32xf32>
    %c0_29 = arith.constant 0 : index
    %c0_30 = arith.constant 0 : index
    %96 = vector.load %arg5[%c0_29, %c0_30] : memref<1x32xf32, #tpu.memory_space<vmem>>, vector<1x32xf32>
    %97 = vector.broadcast %96 : vector<1x32xf32> to vector<8x32xf32>
    %98 = arith.addf %95, %97 : vector<8x32xf32>
    %99 = arith.addf %1, %98 : vector<8x32xf32>
    %c0_31 = arith.constant 0 : index
    %c0_32 = arith.constant 0 : index
    %100 = vector.load %arg6[%c0_31, %c0_32] : memref<1x32xf32, #tpu.memory_space<vmem>>, vector<1x32xf32>
    %c0_33 = arith.constant 0 : index
    %c0_34 = arith.constant 0 : index
    %101 = vector.load %arg7[%c0_33, %c0_34] : memref<1x32xf32, #tpu.memory_space<vmem>>, vector<1x32xf32>
    %cst_35 = arith.constant dense<0.000000e+00> : vector<8xf32>
    %102 = vector.multi_reduction <add>, %99, %cst_35 [1] : vector<8x32xf32> to vector<8xf32>
    %103 = vector.shape_cast %102 : vector<8xf32> to vector<8x1xf32>
    %cst_36 = arith.constant 3.200000e+01 : f32
    %104 = vector.broadcast %cst_36 : f32 to vector<8x1xf32>
    %105 = arith.divf %103, %104 : vector<8x1xf32>
    %106 = vector.broadcast %105 : vector<8x1xf32> to vector<8x32xf32>
    %107 = arith.subf %99, %106 : vector<8x32xf32>
    %108 = arith.mulf %107, %107 : vector<8x32xf32>
    %cst_37 = arith.constant dense<0.000000e+00> : vector<8xf32>
    %109 = vector.multi_reduction <add>, %108, %cst_37 [1] : vector<8x32xf32> to vector<8xf32>
    %110 = vector.shape_cast %109 : vector<8xf32> to vector<8x1xf32>
    %cst_38 = arith.constant 3.200000e+01 : f32
    %111 = vector.broadcast %cst_38 : f32 to vector<8x1xf32>
    %112 = arith.divf %110, %111 : vector<8x1xf32>
    %113 = vector.broadcast %105 : vector<8x1xf32> to vector<8x32xf32>
    %114 = arith.subf %99, %113 : vector<8x32xf32>
    %cst_39 = arith.constant 9.99999974E-6 : f32
    %115 = vector.broadcast %cst_39 : f32 to vector<8x1xf32>
    %116 = arith.addf %112, %115 : vector<8x1xf32>
    %117 = math.rsqrt %116 : vector<8x1xf32>
    %118 = vector.broadcast %117 : vector<8x1xf32> to vector<8x32xf32>
    %119 = arith.mulf %114, %118 : vector<8x32xf32>
    %120 = vector.broadcast %100 : vector<1x32xf32> to vector<8x32xf32>
    %121 = arith.mulf %119, %120 : vector<8x32xf32>
    %122 = vector.broadcast %101 : vector<1x32xf32> to vector<8x32xf32>
    %123 = arith.addf %121, %122 : vector<8x32xf32>
    %c0_40 = arith.constant 0 : index
    %c0_41 = arith.constant 0 : index
    %c0_42 = arith.constant 0 : index
    %124 = vector.load %arg8[%c0_40, %c0_41, %c0_42] : memref<1x8x32xf32, #tpu.memory_space<vmem>>, vector<1x8x32xf32>
    %125 = vector.shape_cast %124 : vector<1x8x32xf32> to vector<8x32xf32>
    %126 = vector.shape_cast %123 : vector<8x32xf32> to vector<1x8x32xf32>
    tpu.vector_store %arg8[%c0_40, %c0_41, %c0_42], %126 {strides = array<i32>} : memref<1x8x32xf32, #tpu.memory_space<vmem>>, vector<1x8x32xf32>,
    return
  }
  func.func @transform_0(%arg0: i32) -> (i32, i32, i32) {
    %c0_i32 = arith.constant 0 : i32
    %c0_i32_0 = arith.constant 0 : i32
    %c0_i32_1 = arith.constant 0 : i32
    return %arg0, %c0_i32, %c0_i32_0 : i32, i32, i32
  }
  func.func @transform_1(%arg0: i32) -> (i32, i32) {
    %c0_i32 = arith.constant 0 : i32
    %c0_i32_0 = arith.constant 0 : i32
    %c0_i32_1 = arith.constant 0 : i32
    return %c0_i32, %c0_i32_0 : i32, i32
  }
  func.func @transform_2(%arg0: i32) -> (i32, i32) {
    %c0_i32 = arith.constant 0 : i32
    %c0_i32_0 = arith.constant 0 : i32
    %c0_i32_1 = arith.constant 0 : i32
    return %c0_i32, %c0_i32_0 : i32, i32
  }
  func.func @transform_3(%arg0: i32) -> (i32, i32) {
    %c0_i32 = arith.constant 0 : i32
    %c0_i32_0 = arith.constant 0 : i32
    %c0_i32_1 = arith.constant 0 : i32
    return %c0_i32, %c0_i32_0 : i32, i32
  }
  func.func @transform_4(%arg0: i32) -> (i32, i32) {
    %c0_i32 = arith.constant 0 : i32
    %c0_i32_0 = arith.constant 0 : i32
    %c0_i32_1 = arith.constant 0 : i32
    return %c0_i32, %c0_i32_0 : i32, i32
  }
  func.func @transform_5(%arg0: i32) -> (i32, i32) {
    %c0_i32 = arith.constant 0 : i32
    %c0_i32_0 = arith.constant 0 : i32
    %c0_i32_1 = arith.constant 0 : i32
    return %c0_i32, %c0_i32_0 : i32, i32
  }
  func.func @transform_6(%arg0: i32) -> (i32, i32) {
    %c0_i32 = arith.constant 0 : i32
    %c0_i32_0 = arith.constant 0 : i32
    %c0_i32_1 = arith.constant 0 : i32
    return %c0_i32, %c0_i32_0 : i32, i32
  }
  func.func @transform_7(%arg0: i32) -> (i32, i32, i32) {
    %c0_i32 = arith.constant 0 : i32
    %c0_i32_0 = arith.constant 0 : i32
    %c0_i32_1 = arith.constant 0 : i32
    return %arg0, %c0_i32, %c0_i32_0 : i32, i32, i32
  }
}

module attributes {stable_mosaic.version = 11 : i64} {
  func.func @gru_ffn_kernel(%arg0: memref<8x2x32xf32, #tpu.memory_space<vmem>>, %arg1: memref<32x192xbf16, #tpu.memory_space<vmem>>, %arg2: memref<64x192xbf16, #tpu.memory_space<vmem>>, %arg3: memref<1x192xf32, #tpu.memory_space<vmem>>, %arg4: memref<1x192xf32, #tpu.memory_space<vmem>>, %arg5: memref<32x192xbf16, #tpu.memory_space<vmem>>, %arg6: memref<64x192xbf16, #tpu.memory_space<vmem>>, %arg7: memref<1x192xf32, #tpu.memory_space<vmem>>, %arg8: memref<1x192xf32, #tpu.memory_space<vmem>>, %arg9: memref<64x32xbf16, #tpu.memory_space<vmem>>, %arg10: memref<64x32xbf16, #tpu.memory_space<vmem>>, %arg11: memref<1x32xf32, #tpu.memory_space<vmem>>, %arg12: memref<1x32xf32, #tpu.memory_space<vmem>>, %arg13: memref<1x32xf32, #tpu.memory_space<vmem>>, %arg14: memref<8x2x32xf32, #tpu.memory_space<vmem>>, %arg15: memref<8x2x192xf32, #tpu.memory_space<vmem>>, %arg16: memref<8x2x192xf32, #tpu.memory_space<vmem>>, %arg17: memref<8x2x64xf32, #tpu.memory_space<vmem>>, %arg18: memref<8x2x64xf32, #tpu.memory_space<vmem>>) attributes {dimension_semantics = [], scalar_prefetch = 0 : i64, scratch_operands = 4 : i64, tpu.core_type = #tpu.core_type<tc>} {
    %c0 = arith.constant 0 : index
    %c0_0 = arith.constant 0 : index
    %c0_1 = arith.constant 0 : index
    %0 = vector.load %arg0[%c0, %c0_0, %c0_1] : memref<8x2x32xf32, #tpu.memory_space<vmem>>, vector<8x2x32xf32>
    %1 = vector.shape_cast %0 : vector<8x2x32xf32> to vector<16x32xf32>
    %2 = arith.truncf %1 : vector<16x32xf32> to vector<16x32xbf16>
    %c0_2 = arith.constant 0 : index
    %c0_3 = arith.constant 0 : index
    %3 = vector.load %arg1[%c0_2, %c0_3] : memref<32x192xbf16, #tpu.memory_space<vmem>>, vector<32x192xbf16>
    %cst = arith.constant dense<0.000000e+00> : vector<16x192xf32>
    %4 = tpu.matmul %2, %3, %cst {dimension_numbers = #tpu.dot_dimension_numbers<[1], [0], [0], [1], [0, 0, 1, 1], [], []>} : vector<16x32xbf16>, vector<32x192xbf16>, vector<16x192xf32> -> vector<16x192xf32>
    %c0_4 = arith.constant 0 : index
    %c0_5 = arith.constant 0 : index
    %5 = vector.load %arg3[%c0_4, %c0_5] : memref<1x192xf32, #tpu.memory_space<vmem>>, vector<1x192xf32>
    %6 = vector.broadcast %5 : vector<1x192xf32> to vector<16x192xf32>
    %7 = arith.addf %4, %6 : vector<16x192xf32>
    %8 = vector.shape_cast %7 : vector<16x192xf32> to vector<8x2x192xf32>
    %c0_6 = arith.constant 0 : index
    %c0_7 = arith.constant 0 : index
    %c0_8 = arith.constant 0 : index
    %9 = vector.load %arg15[%c0_6, %c0_7, %c0_8] : memref<8x2x192xf32, #tpu.memory_space<vmem>>, vector<8x2x192xf32>
    tpu.vector_store %arg15[%c0_6, %c0_7, %c0_8], %8 {strides = array<i32>} : memref<8x2x192xf32, #tpu.memory_space<vmem>>, vector<8x2x192xf32>,
    %c0_9 = arith.constant 0 : index
    %c0_10 = arith.constant 0 : index
    %10 = vector.load %arg5[%c0_9, %c0_10] : memref<32x192xbf16, #tpu.memory_space<vmem>>, vector<32x192xbf16>
    %cst_11 = arith.constant dense<0.000000e+00> : vector<16x192xf32>
    %11 = tpu.matmul %2, %10, %cst_11 {dimension_numbers = #tpu.dot_dimension_numbers<[1], [0], [0], [1], [0, 0, 1, 1], [], []>} : vector<16x32xbf16>, vector<32x192xbf16>, vector<16x192xf32> -> vector<16x192xf32>
    %c0_12 = arith.constant 0 : index
    %c0_13 = arith.constant 0 : index
    %12 = vector.load %arg7[%c0_12, %c0_13] : memref<1x192xf32, #tpu.memory_space<vmem>>, vector<1x192xf32>
    %13 = vector.broadcast %12 : vector<1x192xf32> to vector<16x192xf32>
    %14 = arith.addf %11, %13 : vector<16x192xf32>
    %15 = vector.shape_cast %14 : vector<16x192xf32> to vector<8x2x192xf32>
    %c0_14 = arith.constant 0 : index
    %c0_15 = arith.constant 0 : index
    %c0_16 = arith.constant 0 : index
    %16 = vector.load %arg16[%c0_14, %c0_15, %c0_16] : memref<8x2x192xf32, #tpu.memory_space<vmem>>, vector<8x2x192xf32>
    tpu.vector_store %arg16[%c0_14, %c0_15, %c0_16], %15 {strides = array<i32>} : memref<8x2x192xf32, #tpu.memory_space<vmem>>, vector<8x2x192xf32>,
    %c0_17 = arith.constant 0 : index
    %c0_18 = arith.constant 0 : index
    %17 = vector.load %arg2[%c0_17, %c0_18] : memref<64x192xbf16, #tpu.memory_space<vmem>>, vector<64x192xbf16>
    %c0_19 = arith.constant 0 : index
    %c0_20 = arith.constant 0 : index
    %18 = vector.load %arg6[%c0_19, %c0_20] : memref<64x192xbf16, #tpu.memory_space<vmem>>, vector<64x192xbf16>
    %c0_21 = arith.constant 0 : index
    %c0_22 = arith.constant 0 : index
    %19 = vector.load %arg4[%c0_21, %c0_22] : memref<1x192xf32, #tpu.memory_space<vmem>>, vector<1x192xf32>
    %c0_23 = arith.constant 0 : index
    %c0_24 = arith.constant 0 : index
    %20 = vector.load %arg8[%c0_23, %c0_24] : memref<1x192xf32, #tpu.memory_space<vmem>>, vector<1x192xf32>
    %cst_25 = arith.constant 0.000000e+00 : f32
    %21 = vector.broadcast %cst_25 : f32 to vector<2x64xf32>
    %c0_i32 = arith.constant 0 : i32
    %c8_i32 = arith.constant 8 : i32
    %22 = arith.addi %c0_i32, %c8_i32 : i32
    %c1_i32 = arith.constant 1 : i32
    %23:2 = scf.for %arg19 = %c0_i32 to %22 step %c1_i32 iter_args(%arg20 = %21, %arg21 = %21) -> (vector<2x64xf32>, vector<2x64xf32>)  : i32 {
      %c7_i32 = arith.constant 7 : i32
      %69 = arith.subi %c7_i32, %arg19 : i32
      %70 = arith.index_cast %arg19 : i32 to index
      %c0_55 = arith.constant 0 : index
      %c0_56 = arith.constant 0 : index
      %71 = vector.load %arg15[%70, %c0_55, %c0_56] : memref<8x2x192xf32, #tpu.memory_space<vmem>>, vector<1x2x192xf32>
      %72 = vector.shape_cast %71 : vector<1x2x192xf32> to vector<2x192xf32>
      %73 = arith.truncf %arg20 : vector<2x64xf32> to vector<2x64xbf16>
      %cst_57 = arith.constant dense<0.000000e+00> : vector<2x192xf32>
      %74 = tpu.matmul %73, %17, %cst_57 {dimension_numbers = #tpu.dot_dimension_numbers<[1], [0], [0], [1], [0, 0, 1, 1], [], []>} : vector<2x64xbf16>, vector<64x192xbf16>, vector<2x192xf32> -> vector<2x192xf32>
      %75 = vector.broadcast %19 : vector<1x192xf32> to vector<2x192xf32>
      %76 = arith.addf %74, %75 : vector<2x192xf32>
      %77 = vector.extract_strided_slice %72 {offsets = [0, 0], sizes = [2, 64], strides = [1, 1]} : vector<2x192xf32> to vector<2x64xf32>
      %78 = vector.extract_strided_slice %76 {offsets = [0, 0], sizes = [2, 64], strides = [1, 1]} : vector<2x192xf32> to vector<2x64xf32>
      %79 = arith.addf %77, %78 : vector<2x64xf32>
      %80 = arith.negf %79 : vector<2x64xf32>
      %81 = math.exp %80 : vector<2x64xf32>
      %cst_58 = arith.constant 1.000000e+00 : f32
      %82 = vector.broadcast %cst_58 : f32 to vector<2x64xf32>
      %83 = arith.addf %82, %81 : vector<2x64xf32>
      %84 = arith.divf %82, %83 : vector<2x64xf32>
      %85 = vector.extract_strided_slice %72 {offsets = [0, 64], sizes = [2, 64], strides = [1, 1]} : vector<2x192xf32> to vector<2x64xf32>
      %86 = vector.extract_strided_slice %76 {offsets = [0, 64], sizes = [2, 64], strides = [1, 1]} : vector<2x192xf32> to vector<2x64xf32>
      %87 = arith.addf %85, %86 : vector<2x64xf32>
      %88 = arith.negf %87 : vector<2x64xf32>
      %89 = math.exp %88 : vector<2x64xf32>
      %cst_59 = arith.constant 1.000000e+00 : f32
      %90 = vector.broadcast %cst_59 : f32 to vector<2x64xf32>
      %91 = arith.addf %90, %89 : vector<2x64xf32>
      %92 = arith.divf %90, %91 : vector<2x64xf32>
      %93 = vector.extract_strided_slice %72 {offsets = [0, 128], sizes = [2, 64], strides = [1, 1]} : vector<2x192xf32> to vector<2x64xf32>
      %94 = vector.extract_strided_slice %76 {offsets = [0, 128], sizes = [2, 64], strides = [1, 1]} : vector<2x192xf32> to vector<2x64xf32>
      %95 = arith.mulf %84, %94 : vector<2x64xf32>
      %96 = arith.addf %93, %95 : vector<2x64xf32>
      %97 = math.tanh %96 : vector<2x64xf32>
      %cst_60 = arith.constant 1.000000e+00 : f32
      %98 = vector.broadcast %cst_60 : f32 to vector<2x64xf32>
      %99 = arith.subf %98, %92 : vector<2x64xf32>
      %100 = arith.mulf %99, %97 : vector<2x64xf32>
      %101 = arith.mulf %92, %arg20 : vector<2x64xf32>
      %102 = arith.addf %100, %101 : vector<2x64xf32>
      %103 = arith.index_cast %69 : i32 to index
      %c0_61 = arith.constant 0 : index
      %c0_62 = arith.constant 0 : index
      %104 = vector.load %arg16[%103, %c0_61, %c0_62] : memref<8x2x192xf32, #tpu.memory_space<vmem>>, vector<1x2x192xf32>
      %105 = vector.shape_cast %104 : vector<1x2x192xf32> to vector<2x192xf32>
      %106 = arith.truncf %arg21 : vector<2x64xf32> to vector<2x64xbf16>
      %cst_63 = arith.constant dense<0.000000e+00> : vector<2x192xf32>
      %107 = tpu.matmul %106, %18, %cst_63 {dimension_numbers = #tpu.dot_dimension_numbers<[1], [0], [0], [1], [0, 0, 1, 1], [], []>} : vector<2x64xbf16>, vector<64x192xbf16>, vector<2x192xf32> -> vector<2x192xf32>
      %108 = vector.broadcast %20 : vector<1x192xf32> to vector<2x192xf32>
      %109 = arith.addf %107, %108 : vector<2x192xf32>
      %110 = vector.extract_strided_slice %105 {offsets = [0, 0], sizes = [2, 64], strides = [1, 1]} : vector<2x192xf32> to vector<2x64xf32>
      %111 = vector.extract_strided_slice %109 {offsets = [0, 0], sizes = [2, 64], strides = [1, 1]} : vector<2x192xf32> to vector<2x64xf32>
      %112 = arith.addf %110, %111 : vector<2x64xf32>
      %113 = arith.negf %112 : vector<2x64xf32>
      %114 = math.exp %113 : vector<2x64xf32>
      %cst_64 = arith.constant 1.000000e+00 : f32
      %115 = vector.broadcast %cst_64 : f32 to vector<2x64xf32>
      %116 = arith.addf %115, %114 : vector<2x64xf32>
      %117 = arith.divf %115, %116 : vector<2x64xf32>
      %118 = vector.extract_strided_slice %105 {offsets = [0, 64], sizes = [2, 64], strides = [1, 1]} : vector<2x192xf32> to vector<2x64xf32>
      %119 = vector.extract_strided_slice %109 {offsets = [0, 64], sizes = [2, 64], strides = [1, 1]} : vector<2x192xf32> to vector<2x64xf32>
      %120 = arith.addf %118, %119 : vector<2x64xf32>
      %121 = arith.negf %120 : vector<2x64xf32>
      %122 = math.exp %121 : vector<2x64xf32>
      %cst_65 = arith.constant 1.000000e+00 : f32
      %123 = vector.broadcast %cst_65 : f32 to vector<2x64xf32>
      %124 = arith.addf %123, %122 : vector<2x64xf32>
      %125 = arith.divf %123, %124 : vector<2x64xf32>
      %126 = vector.extract_strided_slice %105 {offsets = [0, 128], sizes = [2, 64], strides = [1, 1]} : vector<2x192xf32> to vector<2x64xf32>
      %127 = vector.extract_strided_slice %109 {offsets = [0, 128], sizes = [2, 64], strides = [1, 1]} : vector<2x192xf32> to vector<2x64xf32>
      %128 = arith.mulf %117, %127 : vector<2x64xf32>
      %129 = arith.addf %126, %128 : vector<2x64xf32>
      %130 = math.tanh %129 : vector<2x64xf32>
      %cst_66 = arith.constant 1.000000e+00 : f32
      %131 = vector.broadcast %cst_66 : f32 to vector<2x64xf32>
      %132 = arith.subf %131, %125 : vector<2x64xf32>
      %133 = arith.mulf %132, %130 : vector<2x64xf32>
      %134 = arith.mulf %125, %arg21 : vector<2x64xf32>
      %135 = arith.addf %133, %134 : vector<2x64xf32>
      %136 = arith.index_cast %arg19 : i32 to index
      %c0_67 = arith.constant 0 : index
      %c0_68 = arith.constant 0 : index
      %137 = vector.load %arg17[%136, %c0_67, %c0_68] : memref<8x2x64xf32, #tpu.memory_space<vmem>>, vector<1x2x64xf32>
      %138 = vector.shape_cast %137 : vector<1x2x64xf32> to vector<2x64xf32>
      %139 = vector.shape_cast %102 : vector<2x64xf32> to vector<1x2x64xf32>
      tpu.vector_store %arg17[%136, %c0_67, %c0_68], %139 {strides = array<i32>} : memref<8x2x64xf32, #tpu.memory_space<vmem>>, vector<1x2x64xf32>,
      %140 = arith.index_cast %69 : i32 to index
      %c0_69 = arith.constant 0 : index
      %c0_70 = arith.constant 0 : index
      %141 = vector.load %arg18[%140, %c0_69, %c0_70] : memref<8x2x64xf32, #tpu.memory_space<vmem>>, vector<1x2x64xf32>
      %142 = vector.shape_cast %141 : vector<1x2x64xf32> to vector<2x64xf32>
      %143 = vector.shape_cast %135 : vector<2x64xf32> to vector<1x2x64xf32>
      tpu.vector_store %arg18[%140, %c0_69, %c0_70], %143 {strides = array<i32>} : memref<8x2x64xf32, #tpu.memory_space<vmem>>, vector<1x2x64xf32>,
      scf.yield %102, %135 : vector<2x64xf32>, vector<2x64xf32>
    }
    %c8_i32_26 = arith.constant 8 : i32
    %c0_27 = arith.constant 0 : index
    %c0_28 = arith.constant 0 : index
    %c0_29 = arith.constant 0 : index
    %24 = vector.load %arg17[%c0_27, %c0_28, %c0_29] : memref<8x2x64xf32, #tpu.memory_space<vmem>>, vector<8x2x64xf32>
    %25 = vector.shape_cast %24 : vector<8x2x64xf32> to vector<16x64xf32>
    %cst_30 = arith.constant 0.000000e+00 : f32
    %26 = vector.broadcast %cst_30 : f32 to vector<16x64xf32>
    %27 = arith.maximumf %25, %26 : vector<16x64xf32>
    %28 = arith.truncf %27 : vector<16x64xf32> to vector<16x64xbf16>
    %c0_31 = arith.constant 0 : index
    %c0_32 = arith.constant 0 : index
    %c0_33 = arith.constant 0 : index
    %29 = vector.load %arg18[%c0_31, %c0_32, %c0_33] : memref<8x2x64xf32, #tpu.memory_space<vmem>>, vector<8x2x64xf32>
    %30 = vector.shape_cast %29 : vector<8x2x64xf32> to vector<16x64xf32>
    %cst_34 = arith.constant 0.000000e+00 : f32
    %31 = vector.broadcast %cst_34 : f32 to vector<16x64xf32>
    %32 = arith.maximumf %30, %31 : vector<16x64xf32>
    %33 = arith.truncf %32 : vector<16x64xf32> to vector<16x64xbf16>
    %c0_35 = arith.constant 0 : index
    %c0_36 = arith.constant 0 : index
    %34 = vector.load %arg9[%c0_35, %c0_36] : memref<64x32xbf16, #tpu.memory_space<vmem>>, vector<64x32xbf16>
    %cst_37 = arith.constant dense<0.000000e+00> : vector<16x32xf32>
    %35 = tpu.matmul %28, %34, %cst_37 {dimension_numbers = #tpu.dot_dimension_numbers<[1], [0], [0], [1], [0, 0, 1, 1], [], []>} : vector<16x64xbf16>, vector<64x32xbf16>, vector<16x32xf32> -> vector<16x32xf32>
    %c0_38 = arith.constant 0 : index
    %c0_39 = arith.constant 0 : index
    %36 = vector.load %arg10[%c0_38, %c0_39] : memref<64x32xbf16, #tpu.memory_space<vmem>>, vector<64x32xbf16>
    %cst_40 = arith.constant dense<0.000000e+00> : vector<16x32xf32>
    %37 = tpu.matmul %33, %36, %cst_40 {dimension_numbers = #tpu.dot_dimension_numbers<[1], [0], [0], [1], [0, 0, 1, 1], [], []>} : vector<16x64xbf16>, vector<64x32xbf16>, vector<16x32xf32> -> vector<16x32xf32>
    %38 = arith.addf %35, %37 : vector<16x32xf32>
    %c0_41 = arith.constant 0 : index
    %c0_42 = arith.constant 0 : index
    %39 = vector.load %arg11[%c0_41, %c0_42] : memref<1x32xf32, #tpu.memory_space<vmem>>, vector<1x32xf32>
    %40 = vector.broadcast %39 : vector<1x32xf32> to vector<16x32xf32>
    %41 = arith.addf %38, %40 : vector<16x32xf32>
    %42 = arith.addf %1, %41 : vector<16x32xf32>
    %c0_43 = arith.constant 0 : index
    %c0_44 = arith.constant 0 : index
    %43 = vector.load %arg12[%c0_43, %c0_44] : memref<1x32xf32, #tpu.memory_space<vmem>>, vector<1x32xf32>
    %c0_45 = arith.constant 0 : index
    %c0_46 = arith.constant 0 : index
    %44 = vector.load %arg13[%c0_45, %c0_46] : memref<1x32xf32, #tpu.memory_space<vmem>>, vector<1x32xf32>
    %cst_47 = arith.constant dense<0.000000e+00> : vector<16xf32>
    %45 = vector.multi_reduction <add>, %42, %cst_47 [1] : vector<16x32xf32> to vector<16xf32>
    %46 = vector.shape_cast %45 : vector<16xf32> to vector<16x1xf32>
    %cst_48 = arith.constant 3.200000e+01 : f32
    %47 = vector.broadcast %cst_48 : f32 to vector<16x1xf32>
    %48 = arith.divf %46, %47 : vector<16x1xf32>
    %49 = vector.broadcast %48 : vector<16x1xf32> to vector<16x32xf32>
    %50 = arith.subf %42, %49 : vector<16x32xf32>
    %51 = arith.mulf %50, %50 : vector<16x32xf32>
    %cst_49 = arith.constant dense<0.000000e+00> : vector<16xf32>
    %52 = vector.multi_reduction <add>, %51, %cst_49 [1] : vector<16x32xf32> to vector<16xf32>
    %53 = vector.shape_cast %52 : vector<16xf32> to vector<16x1xf32>
    %cst_50 = arith.constant 3.200000e+01 : f32
    %54 = vector.broadcast %cst_50 : f32 to vector<16x1xf32>
    %55 = arith.divf %53, %54 : vector<16x1xf32>
    %56 = vector.broadcast %48 : vector<16x1xf32> to vector<16x32xf32>
    %57 = arith.subf %42, %56 : vector<16x32xf32>
    %cst_51 = arith.constant 9.99999974E-6 : f32
    %58 = vector.broadcast %cst_51 : f32 to vector<16x1xf32>
    %59 = arith.addf %55, %58 : vector<16x1xf32>
    %60 = math.rsqrt %59 : vector<16x1xf32>
    %61 = vector.broadcast %60 : vector<16x1xf32> to vector<16x32xf32>
    %62 = arith.mulf %57, %61 : vector<16x32xf32>
    %63 = vector.broadcast %43 : vector<1x32xf32> to vector<16x32xf32>
    %64 = arith.mulf %62, %63 : vector<16x32xf32>
    %65 = vector.broadcast %44 : vector<1x32xf32> to vector<16x32xf32>
    %66 = arith.addf %64, %65 : vector<16x32xf32>
    %67 = vector.shape_cast %66 : vector<16x32xf32> to vector<8x2x32xf32>
    %c0_52 = arith.constant 0 : index
    %c0_53 = arith.constant 0 : index
    %c0_54 = arith.constant 0 : index
    %68 = vector.load %arg14[%c0_52, %c0_53, %c0_54] : memref<8x2x32xf32, #tpu.memory_space<vmem>>, vector<8x2x32xf32>
    tpu.vector_store %arg14[%c0_52, %c0_53, %c0_54], %67 {strides = array<i32>} : memref<8x2x32xf32, #tpu.memory_space<vmem>>, vector<8x2x32xf32>,
    return
  }
}

</mosaic_0001>

<llo_original>
// kernel: transformer_encoder_layer.2
$region0: #{transformer_encoder_layer.2}
  #allocation0 [shape = 'u32[]', space=smem, size = 0x4, offset = 0x4, fixed_abs, tag = 'smem constant byte address 0x4 - core index']
  #allocation1 [shape = 'u32[144,128]{1,0:T(1,128)}', space=vmem, size = 0x12000, scoped, tag = 'internal scratch']
  %s0 = inlined_call_operand.vmem [shape: f32[2,8,32], index: 0, kind: input, shape index: {}]
  %s1 = inlined_call_operand.vmem [shape: bf16[32,96], index: 1, kind: input, shape index: {}]
  %s2 = inlined_call_operand.hbm [shape: f32[1,96], index: 2, kind: input, shape index: {}]
  %s3 = inlined_call_operand.vmem [shape: bf16[32,32], index: 3, kind: input, shape index: {}]
  %s4 = inlined_call_operand.hbm [shape: f32[1,32], index: 4, kind: input, shape index: {}]
  %s5 = inlined_call_operand.hbm [shape: f32[1,32], index: 5, kind: input, shape index: {}]
  %s6 = inlined_call_operand.hbm [shape: f32[1,32], index: 6, kind: input, shape index: {}]
  %s7 = inlined_call_operand.vmem [shape: f32[2,8,32], index: 7, kind: output, shape index: {}]
  %s8 = sld [smem:[#allocation0]]
  $region77: #{transformer_encoder_layer.2} parent=0
    _
  %s10 = ssub.s32 1, %s8
  %s11 = scalar_select 0, %s10, %s8
  $region1: #{transformer_encoder_layer.2} parent=0
    #allocation2 [shape = 'u8[512]{0}', space=vmem, size = 0x400, scoped, tag = 'input window, operand 2, single buffered']
    #allocation3 [shape = 's32[2]{0}', space=sflag, size = 0x8, scoped, tag = 'scoped memory for transformer_encoder_layer.2']
    #allocation4 [shape = 'u8[512]{0}', space=vmem, size = 0x400, scoped, tag = 'input window, operand 4, single buffered']
    #allocation5 [shape = 's32[1]{0}', space=sflag, size = 0x4, scoped, tag = 'scoped memory for transformer_encoder_layer.2']
    #allocation6 [shape = 'u8[512]{0}', space=vmem, size = 0x400, scoped, tag = 'input window, operand 5, single buffered']
    #allocation7 [shape = 'u8[512]{0}', space=vmem, size = 0x400, scoped, tag = 'input window, operand 6, single buffered']
    #allocation8 [shape = 's32[1]{0}', space=sflag, size = 0x4, scoped, tag = 'scoped memory for transformer_encoder_layer.2']
    %12 = vsyncpa [#allocation3], 0
    %13 = vsyncpa [#allocation5], 0
    %14 = vsyncpa [#allocation8], 0
    loop: start=0, step=1, limit=4
    $region2: #{transformer_encoder_layer.2} parent=1 // loop_pre_header
      _
    $region3: #{transformer_encoder_layer.2} parent=1 // loop_header
      %s16 = sphi 0, %s20
      %p17 = scmp.ge.s32.totalorder %s16, 4
      %s26 = sphi 0, %s28
      %s29 = sphi 0, %s26
      %s30 = sphi 0, %s29
      %s46 = sphi 0, %s30
      %s50 = sphi 0, %s50
      %s52 = sphi 0, %s50
      %s53 = sphi 0, %s52
      %s67 = sphi 0, %s53
      %s71 = sphi 0, %s71
      %s73 = sphi 0, %s71
      %s74 = sphi 0, %s73
      %s88 = sphi 0, %s74
      %s92 = sphi 0, %s92
      %s94 = sphi 0, %s92
      %s95 = sphi 0, %s94
      %s109 = sphi 0, %s95
      %s113 = sphi 0, %s113
      %s115 = sphi 0, %s113
      %s116 = sphi 0, %s115
      %s130 = sphi 0, %s116
      %s134 = sphi 0, %s134
      %s136 = sphi 0, %s134
      %s137 = sphi 0, %s136
      %s151 = sphi 0, %s137
      %s155 = sphi 0, %s155
      %s157 = sphi 0, %s155
      %s158 = sphi 0, %s157
      %s172 = sphi 0, %s158
      %s178 = sphi 0, %s180
      %s181 = sphi 0, %s178
      %s182 = sphi 0, %s181
      %s198 = sphi 0, %s182
    $region4: #{transformer_encoder_layer.2} parent=1 // loop_header_branch
      %19 = sbr.rel (%p17) target = $region8
    $region5: #{transformer_encoder_layer.2} parent=1 // loop_body
      %s21 = ssub.s32 %s16, 1
      %s22 = ssub.s32 %s16, 2
      %s23 = sadd.s32 %s16, 1
      %s24 = ssub.s32 %s16, %s23
      %p25 = scmp.eq.s32.totalorder %s24, 0
      %s27 = sadd.s32 %s26, 1
      %s28 = scalar_select %p25, %s26, %s27
      %p31 = pneg %p25
      %p32 = scmp.eq.s32.totalorder %s16, 1
      %p33 = por %p31, %p32
      %p34 = scmp.ne.s32.totalorder %s26, %s29
      %p35 = scmp.eq.s32.totalorder %s16, 0
      %p36 = por %p34, %p35
      %p37 = scmp.ne.s32.totalorder %s26, %s29
      %p38 = scmp.eq.s32.totalorder %s21, 1
      %p39 = por %p37, %p38
      %p40 = scmp.ne.s32.totalorder %s29, %s30
      %p41 = scmp.eq.s32.totalorder %s21, 0
      %p42 = por %p40, %p41
      %p43 = scmp.ne.s32.totalorder %s29, %s30
      %p44 = scmp.eq.s32.totalorder %s22, 1
      %p45 = por %p43, %p44
      %p47 = scmp.ne.s32.totalorder %s30, %s46
      %p48 = scmp.eq.s32.totalorder %s22, 0
      %p49 = por %p47, %p48
      %s51 = sadd.s32 %s50, 1
      %p54 = scmp.eq.s32.totalorder %s16, 1
      %p55 = scmp.ne.s32.totalorder %s50, %s52
      %p56 = scmp.eq.s32.totalorder %s16, 0
      %p57 = por %p55, %p56
      %p58 = scmp.ne.s32.totalorder %s50, %s52
      %p59 = scmp.eq.s32.totalorder %s21, 1
      %p60 = por %p58, %p59
      %p61 = scmp.ne.s32.totalorder %s52, %s53
      %p62 = scmp.eq.s32.totalorder %s21, 0
      %p63 = por %p61, %p62
      %p64 = scmp.ne.s32.totalorder %s52, %s53
      %p65 = scmp.eq.s32.totalorder %s22, 1
      %p66 = por %p64, %p65
      %p68 = scmp.ne.s32.totalorder %s53, %s67
      %p69 = scmp.eq.s32.totalorder %s22, 0
      %p70 = por %p68, %p69
      %s72 = sadd.s32 %s71, 1
      %p75 = scmp.eq.s32.totalorder %s16, 1
      %p76 = scmp.ne.s32.totalorder %s71, %s73
      %p77 = scmp.eq.s32.totalorder %s16, 0
      %p78 = por %p76, %p77
      %p79 = scmp.ne.s32.totalorder %s71, %s73
      %p80 = scmp.eq.s32.totalorder %s21, 1
      %p81 = por %p79, %p80
      %p82 = scmp.ne.s32.totalorder %s73, %s74
      %p83 = scmp.eq.s32.totalorder %s21, 0
      %p84 = por %p82, %p83
      %p85 = scmp.ne.s32.totalorder %s73, %s74
      %p86 = scmp.eq.s32.totalorder %s22, 1
      %p87 = por %p85, %p86
      %p89 = scmp.ne.s32.totalorder %s74, %s88
      %p90 = scmp.eq.s32.totalorder %s22, 0
      %p91 = por %p89, %p90
      %s93 = sadd.s32 %s92, 1
      %p96 = scmp.eq.s32.totalorder %s16, 1
      %p97 = scmp.ne.s32.totalorder %s92, %s94
      %p98 = scmp.eq.s32.totalorder %s16, 0
      %p99 = por %p97, %p98
      %p100 = scmp.ne.s32.totalorder %s92, %s94
      %p101 = scmp.eq.s32.totalorder %s21, 1
      %p102 = por %p100, %p101
      %p103 = scmp.ne.s32.totalorder %s94, %s95
      %p104 = scmp.eq.s32.totalorder %s21, 0
      %p105 = por %p103, %p104
      %p106 = scmp.ne.s32.totalorder %s94, %s95
      %p107 = scmp.eq.s32.totalorder %s22, 1
      %p108 = por %p106, %p107
      %p110 = scmp.ne.s32.totalorder %s95, %s109
      %p111 = scmp.eq.s32.totalorder %s22, 0
      %p112 = por %p110, %p111
      %s114 = sadd.s32 %s113, 1
      %p117 = scmp.eq.s32.totalorder %s16, 1
      %p118 = scmp.ne.s32.totalorder %s113, %s115
      %p119 = scmp.eq.s32.totalorder %s16, 0
      %p120 = por %p118, %p119
      %p121 = scmp.ne.s32.totalorder %s113, %s115
      %p122 = scmp.eq.s32.totalorder %s21, 1
      %p123 = por %p121, %p122
      %p124 = scmp.ne.s32.totalorder %s115, %s116
      %p125 = scmp.eq.s32.totalorder %s21, 0
      %p126 = por %p124, %p125
      %p127 = scmp.ne.s32.totalorder %s115, %s116
      %p128 = scmp.eq.s32.totalorder %s22, 1
      %p129 = por %p127, %p128
      %p131 = scmp.ne.s32.totalorder %s116, %s130
      %p132 = scmp.eq.s32.totalorder %s22, 0
      %p133 = por %p131, %p132
      %s135 = sadd.s32 %s134, 1
      %p138 = scmp.eq.s32.totalorder %s16, 1
      %p139 = scmp.ne.s32.totalorder %s134, %s136
      %p140 = scmp.eq.s32.totalorder %s16, 0
      %p141 = por %p139, %p140
      %p142 = scmp.ne.s32.totalorder %s134, %s136
      %p143 = scmp.eq.s32.totalorder %s21, 1
      %p144 = por %p142, %p143
      %p145 = scmp.ne.s32.totalorder %s136, %s137
      %p146 = scmp.eq.s32.totalorder %s21, 0
      %p147 = por %p145, %p146
      %p148 = scmp.ne.s32.totalorder %s136, %s137
      %p149 = scmp.eq.s32.totalorder %s22, 1
      %p150 = por %p148, %p149
      %p152 = scmp.ne.s32.totalorder %s137, %s151
      %p153 = scmp.eq.s32.totalorder %s22, 0
      %p154 = por %p152, %p153
      %s156 = sadd.s32 %s155, 1
      %p159 = scmp.eq.s32.totalorder %s16, 1
      %p160 = scmp.ne.s32.totalorder %s155, %s157
      %p161 = scmp.eq.s32.totalorder %s16, 0
      %p162 = por %p160, %p161
      %p163 = scmp.ne.s32.totalorder %s155, %s157
      %p164 = scmp.eq.s32.totalorder %s21, 1
      %p165 = por %p163, %p164
      %p166 = scmp.ne.s32.totalorder %s157, %s158
      %p167 = scmp.eq.s32.totalorder %s21, 0
      %p168 = por %p166, %p167
      %p169 = scmp.ne.s32.totalorder %s157, %s158
      %p170 = scmp.eq.s32.totalorder %s22, 1
      %p171 = por %p169, %p170
      %p173 = scmp.ne.s32.totalorder %s158, %s172
      %p174 = scmp.eq.s32.totalorder %s22, 0
      %p175 = por %p173, %p174
      %s176 = ssub.s32 %s16, %s23
      %p177 = scmp.eq.s32.totalorder %s176, 0
      %s179 = sadd.s32 %s178, 1
      %s180 = scalar_select %p177, %s178, %s179
      %p183 = pneg %p177
      %p184 = scmp.eq.s32.totalorder %s16, 1
      %p185 = por %p183, %p184
      %p186 = scmp.ne.s32.totalorder %s178, %s181
      %p187 = scmp.eq.s32.totalorder %s16, 0
      %p188 = por %p186, %p187
      %p189 = scmp.ne.s32.totalorder %s178, %s181
      %p190 = scmp.eq.s32.totalorder %s21, 1
      %p191 = por %p189, %p190
      %p192 = scmp.ne.s32.totalorder %s181, %s182
      %p193 = scmp.eq.s32.totalorder %s21, 0
      %p194 = por %p192, %p193
      %p195 = scmp.ne.s32.totalorder %s181, %s182
      %p196 = scmp.eq.s32.totalorder %s22, 1
      %p197 = por %p195, %p196
      %p199 = scmp.ne.s32.totalorder %s182, %s198
      %p200 = scmp.eq.s32.totalorder %s22, 0
      %p201 = por %p199, %p200
      %p202 = scmp.le.s32.totalorder 1, %s16
      %p203 = scmp.lt.s32.totalorder %s16, 3
      %p204 = pnand %p202, %p203
      %p205 = pneg %p204
      // Predicated region
      $region9: #{transformer_encoder_layer.2} parent=5 // pred_check
        _
      $region10: #{transformer_encoder_layer.2} parent=5 // pred_check_branch
        %207 = sbr.rel (%p204) target = $region12
      $region11: #{transformer_encoder_layer.2} parent=5 // pred_region
        %s208 = ssub.s32 %s16, 1
        // Predicated region
        $region13: #{transformer_encoder_layer.2} parent=11 // pred_check
          %p209 = pneg %p63
        $region14: #{transformer_encoder_layer.2} parent=11 // pred_check_branch
          %211 = sbr.rel (%p209) target = $region16
        $region15: #{transformer_encoder_layer.2} parent=11 // pred_region
          _
        $region16: #{transformer_encoder_layer.2} parent=11 // pred_fallthru
          _
        // Predicated region
        $region17: #{transformer_encoder_layer.2} parent=11 // pred_check
          %p212 = pneg %p84
        $region18: #{transformer_encoder_layer.2} parent=11 // pred_check_branch
          %214 = sbr.rel (%p212) target = $region20
        $region19: #{transformer_encoder_layer.2} parent=11 // pred_region
          %s216 = ssub.s32 16, 16
          %217 = vsyncadd [#allocation3], %s216
          %s219 = sshll.u32 [#allocation2], 4
          %s220 = int_to_ptr.vmem [resolvable:$true] %s219
          %222 = dma.hbm_to_vmem [thread:$0]  %s2, 16, %s220, [#allocation3]
        $region20: #{transformer_encoder_layer.2} parent=11 // pred_fallthru
          _
        // Predicated region
        $region21: #{transformer_encoder_layer.2} parent=11 // pred_check
          %p223 = pneg %p105
        $region22: #{transformer_encoder_layer.2} parent=11 // pred_check_branch
          %225 = sbr.rel (%p223) target = $region24
        $region23: #{transformer_encoder_layer.2} parent=11 // pred_region
          _
        $region24: #{transformer_encoder_layer.2} parent=11 // pred_fallthru
          _
        // Predicated region
        $region25: #{transformer_encoder_layer.2} parent=11 // pred_check
          %p226 = pneg %p126
        $region26: #{transformer_encoder_layer.2} parent=11 // pred_check_branch
          %228 = sbr.rel (%p226) target = $region28
        $region27: #{transformer_encoder_layer.2} parent=11 // pred_region
          %s230 = ssub.s32 16, 16
          %231 = vsyncadd [#allocation5], %s230
          %s233 = sshll.u32 [#allocation4], 4
          %s234 = int_to_ptr.vmem [resolvable:$true] %s233
          %236 = dma.hbm_to_vmem [thread:$0]  %s4, 16, %s234, [#allocation5]
        $region28: #{transformer_encoder_layer.2} parent=11 // pred_fallthru
          _
        // Predicated region
        $region29: #{transformer_encoder_layer.2} parent=11 // pred_check
          %p237 = pneg %p147
        $region30: #{transformer_encoder_layer.2} parent=11 // pred_check_branch
          %239 = sbr.rel (%p237) target = $region32
        $region31: #{transformer_encoder_layer.2} parent=11 // pred_region
          %s241 = ssub.s32 16, 16
          %242 = vsyncadd [#allocation5], %s241
          %s244 = sshll.u32 [#allocation6], 4
          %s245 = int_to_ptr.vmem [resolvable:$true] %s244
          %247 = dma.hbm_to_vmem [thread:$0]  %s5, 16, %s245, [#allocation5]
        $region32: #{transformer_encoder_layer.2} parent=11 // pred_fallthru
          _
        // Predicated region
        $region33: #{transformer_encoder_layer.2} parent=11 // pred_check
          %p248 = pneg %p168
        $region34: #{transformer_encoder_layer.2} parent=11 // pred_check_branch
          %250 = sbr.rel (%p248) target = $region36
        $region35: #{transformer_encoder_layer.2} parent=11 // pred_region
          %s252 = ssub.s32 16, 16
          %253 = vsyncadd [#allocation8], %s252
          %s255 = sshll.u32 [#allocation7], 4
          %s256 = int_to_ptr.vmem [resolvable:$true] %s255
          %258 = dma.hbm_to_vmem [thread:$0]  %s6, 16, %s256, [#allocation8]
        $region36: #{transformer_encoder_layer.2} parent=11 // pred_fallthru
          _
      $region12: #{transformer_encoder_layer.2} parent=5 // pred_fallthru
        _
      %p259 = scmp.lt.s32.totalorder %s16, 2
      // Predicated region
      $region37: #{transformer_encoder_layer.2} parent=5 // pred_check
        %p260 = pneg %p259
      $region38: #{transformer_encoder_layer.2} parent=5 // pred_check_branch
        %262 = sbr.rel (%p260) target = $region40
      $region39: #{transformer_encoder_layer.2} parent=5 // pred_region
        // Predicated region
        $region41: #{transformer_encoder_layer.2} parent=39 // pred_check
          %p263 = pneg %p36
        $region42: #{transformer_encoder_layer.2} parent=39 // pred_check_branch
          %265 = sbr.rel (%p263) target = $region44
        $region43: #{transformer_encoder_layer.2} parent=39 // pred_region
          %p266 = scmp.lt.s32.totalorder %s16, 1
          %s267 = scalar_select %p266, %s16, 1
          %s268 = smul.addr %s267, 8
          %s269 = scalar_lea.vmem %s0, %s268
        $region44: #{transformer_encoder_layer.2} parent=39 // pred_fallthru
          _
      $region40: #{transformer_encoder_layer.2} parent=5 // pred_fallthru
        _
      %p270 = scmp.le.s32.totalorder 1, %s16
      %p271 = scmp.lt.s32.totalorder %s16, 3
      %p272 = pnand %p270, %p271
      %p273 = pneg %p272
      // Predicated region
      $region45: #{transformer_encoder_layer.2} parent=5 // pred_check
        _
      $region46: #{transformer_encoder_layer.2} parent=5 // pred_check_branch
        %275 = sbr.rel (%p272) target = $region48
      $region47: #{transformer_encoder_layer.2} parent=5 // pred_region
        %s276 = ssub.s32 %s16, 1
        // Predicated region
        $region49: #{transformer_encoder_layer.2} parent=47 // pred_check
          %p277 = pneg %p84
        $region50: #{transformer_encoder_layer.2} parent=47 // pred_check_branch
          %279 = sbr.rel (%p277) target = $region52
        $region51: #{transformer_encoder_layer.2} parent=47 // pred_region
          %280 = dma.done [#allocation3], 16
        $region52: #{transformer_encoder_layer.2} parent=47 // pred_fallthru
          _
        // Predicated region
        $region53: #{transformer_encoder_layer.2} parent=47 // pred_check
          %p281 = pneg %p126
        $region54: #{transformer_encoder_layer.2} parent=47 // pred_check_branch
          %283 = sbr.rel (%p281) target = $region56
        $region55: #{transformer_encoder_layer.2} parent=47 // pred_region
          %284 = dma.done [#allocation5], 16
        $region56: #{transformer_encoder_layer.2} parent=47 // pred_fallthru
          _
        // Predicated region
        $region57: #{transformer_encoder_layer.2} parent=47 // pred_check
          %p285 = pneg %p147
        $region58: #{transformer_encoder_layer.2} parent=47 // pred_check_branch
          %287 = sbr.rel (%p285) target = $region60
        $region59: #{transformer_encoder_layer.2} parent=47 // pred_region
          %288 = dma.done [#allocation5], 16
        $region60: #{transformer_encoder_layer.2} parent=47 // pred_fallthru
          _
        // Predicated region
        $region61: #{transformer_encoder_layer.2} parent=47 // pred_check
          %p289 = pneg %p168
        $region62: #{transformer_encoder_layer.2} parent=47 // pred_check_branch
          %291 = sbr.rel (%p289) target = $region64
        $region63: #{transformer_encoder_layer.2} parent=47 // pred_region
          %292 = dma.done [#allocation8], 16
        $region64: #{transformer_encoder_layer.2} parent=47 // pred_fallthru
          _
        %p293 = scmp.lt.s32.totalorder %s21, 1
        %s294 = scalar_select %p293, %s21, 1
        %s295 = smul.addr %s294, 8
        %s296 = scalar_lea.vmem %s0, %s295
        %p297 = pneg %p42
        %p298 = pneg %p39
        %p299 = pneg %p63
        %p300 = pneg %p60
        %p301 = pneg %p84
        %p302 = pneg %p81
        %p303 = pneg %p105
        %p304 = pneg %p102
        %p305 = pneg %p126
        %p306 = pneg %p123
        %p307 = pneg %p147
        %p308 = pneg %p144
        %p309 = pneg %p168
        %p310 = pneg %p165
        %p311 = pneg %p194
        %p312 = pneg %p191
        %p313 = scmp.lt.s32.totalorder %s21, 1
        %s314 = scalar_select %p313, %s21, 1
        %s315 = smul.addr %s314, 8
        %s316 = scalar_lea.vmem %s7, %s315
        %p317 = scmp.lt.s32.totalorder %s21, 1
        %s318 = scalar_select %p317, %s21, 1
        %s319 = smul.addr %s318, 8
        %s320 = scalar_lea.vmem %s0, %s319
        %p321 = scmp.lt.s32.totalorder %s21, 1
        %s322 = scalar_select %p321, %s21, 1
        %s323 = smul.addr %s322, 8
        %s324 = scalar_lea.vmem %s7, %s323
        %v326 = vld [vmem:[%s320] sm:$0xff]
        %v327 = vpack.c.bf16 %v326, %v326
        %v328 = vld [vmem:[%s1] sm:$0xf]
        %v329 = vld [vmem:[%s1 + $0x4] sm:$0xf]
        %v330 = vld [vmem:[%s1 + $0x8] sm:$0xf]
        %v331 = vld [vmem:[%s1 + $0xc] sm:$0xf]
        %v332 = vld [vmem:[#allocation2] sm:$0x1]
        %v334 = vlaneseq
        %v335 = vshrl.u32 %v334, 7
        %v336 = vsub.s32 0, %v335
        %v337 = vrot.slane %v332, %v336
        %v343 = vunpack.c.l.b16 %v328
        %v344 = vunpack.c.l.b16 %v329
        %v345 = vunpack.c.l.b16 %v330
        %v346 = vunpack.c.l.b16 %v331
        %v347 = vpack.c.b16 %v344, %v343
        %v348 = vpack.c.b16 %v346, %v345
        %vm351 = vcmask 261120
        %v353 = vsel %vm351, %v327, 0
        %355 = vmatprep.subr.bf16.mxu0 0
        %356 = vmatpush1.bf16.msra.mxu0 %v347
        %357 = vmatprep.subr.bf16.mxu0 0
        %358 = vmatpush1.bf16.msra.mxu0 %v348
        %359 = vmatprep.subr.bf16.mxu0 0
        %360 = vmatpush1.bf16.msra.mxu0 0
        %361 = vmatprep.subr.bf16.mxu0 0
        %362 = vmatpush1.bf16.msra.mxu0 0
        %363 = vmatprep.subr.bf16.mxu0 0
        %364 = vmatpush1.bf16.msra.mxu0 0
        %365 = vmatprep.subr.bf16.mxu0 0
        %366 = vmatpush1.bf16.msra.mxu0 0
        %367 = vmatprep.subr.bf16.mxu0 0
        %368 = vmatpush1.bf16.msra.mxu0 0
        %369 = vmatprep.subr.bf16.mxu0 0
        %370 = vmatpush1.bf16.msra.mxu0 0
        %371 = vmatprep.subr.bf16.mxu0 0
        %372 = vmatpush1.bf16.msra.mxu0 0
        %373 = vmatprep.subr.bf16.mxu0 0
        %374 = vmatpush1.bf16.msra.mxu0 0
        %375 = vmatprep.subr.bf16.mxu0 0
        %376 = vmatpush1.bf16.msra.mxu0 0
        %377 = vmatprep.subr.bf16.mxu0 0
        %378 = vmatpush1.bf16.msra.mxu0 0
        %379 = vmatprep.subr.bf16.mxu0 0
        %380 = vmatpush1.bf16.msra.mxu0 0
        %381 = vmatprep.subr.bf16.mxu0 0
        %382 = vmatpush1.bf16.msra.mxu0 0
        %383 = vmatprep.subr.bf16.mxu0 0
        %384 = vmatpush1.bf16.msra.mxu0 0
        %385 = vmatprep.subr.bf16.mxu0 0
        %386 = vmatpush1.bf16.msra.mxu0 0
        %387 = vmatprep.mubr.bf16.mxu0 0
        %388 = vmatmul.mubr.bf16.gmra.mrb[0].mxu0 %v353
        %v389 = vpop.f32.mrb[0].mxu0
        %v390 = vadd.f32 %v337, %v389
        %v391 = vpop.f32.mrb[0].mxu0
        %v392 = vpop.f32.mrb[0].mxu0
        %v393 = vpop.f32.mrb[0].mxu0
        %394 = vdwg.mxu0
        %v395 = vmul.f32 %v390, 0.35355338
        %v396 = vpack.c.bf16 %v395, %v395
        %v397 = vpack.c.bf16 %v390, %v390
        %399 = vrot.lane.b32.xlu0 %v397, 96
        %v400 = vpop.permute.xlu0 %399
        %vm401 = vcmask 64512
        %v403 = vsel %vm401, %v396, 0
        %v406 = vsel %vm401, %v400, 0
        %408 = vmatprep.subr.bf16.mxu0 0
        %409 = vmatpush1.bf16.xpose.msra.mxu0 %v406
        %410 = vmatprep.subr.bf16.mxu0 0
        %411 = vmatpush1.bf16.xpose.msra.mxu0 0
        %412 = vmatprep.subr.bf16.mxu0 0
        %413 = vmatpush1.bf16.xpose.msra.mxu0 0
        %414 = vmatprep.subr.bf16.mxu0 0
        %415 = vmatpush1.bf16.xpose.msra.mxu0 0
        %416 = vmatprep.subr.bf16.mxu0 0
        %417 = vmatpush1.bf16.xpose.msra.mxu0 0
        %418 = vmatprep.subr.bf16.mxu0 0
        %419 = vmatpush1.bf16.xpose.msra.mxu0 0
        %420 = vmatprep.subr.bf16.mxu0 0
        %421 = vmatpush1.bf16.xpose.msra.mxu0 0
        %422 = vmatprep.subr.bf16.mxu0 0
        %423 = vmatpush1.bf16.xpose.msra.mxu0 0
        %424 = vmatprep.subr.bf16.mxu0 0
        %425 = vmatpush1.bf16.xpose.msra.mxu0 0
        %426 = vmatprep.subr.bf16.mxu0 0
        %427 = vmatpush1.bf16.xpose.msra.mxu0 0
        %428 = vmatprep.subr.bf16.mxu0 0
        %429 = vmatpush1.bf16.xpose.msra.mxu0 0
        %430 = vmatprep.subr.bf16.mxu0 0
        %431 = vmatpush1.bf16.xpose.msra.mxu0 0
        %432 = vmatprep.subr.bf16.mxu0 0
        %433 = vmatpush1.bf16.xpose.msra.mxu0 0
        %434 = vmatprep.subr.bf16.mxu0 0
        %435 = vmatpush1.bf16.xpose.msra.mxu0 0
        %436 = vmatprep.subr.bf16.mxu0 0
        %437 = vmatpush1.bf16.xpose.msra.mxu0 0
        %438 = vmatprep.subr.bf16.mxu0 0
        %439 = vmatpush1.bf16.xpose.msra.mxu0 0
        %440 = vmatprep.mubr.bf16.mxu0 0
        %441 = vmatmul.mubr.bf16.gmra.mrb[0].mxu0 %v403
        %v442 = vpop.f32.mrb[0].mxu0
        %v443 = vadd.f32 0.0, %v442
        %v444 = vpop.f32.mrb[0].mxu0
        %v445 = vpop.f32.mrb[0].mxu0
        %v446 = vpop.f32.mrb[0].mxu0
        %447 = vdwg.mxu0
        %v448 = vsel %vm401, %v443, -inf
        %449 = vmax.xlane.f32.xlu0 %v448
        %v450 = vpop.xlane.xlu0 %449
        %v451 = vsub.f32 %v443, %v450
        %v452 = vmul.f32 %v451, 1.442695
        %v453 = vpow.pop %v452
        %v454 = vsel %vm401, %v453, 0.0
        %455 = vadd.xlane.f32.xlu0 %v454
        %v456 = vpop.xlane.xlu0 %455
        %v457 = vrcp.pop %v456
        %v458 = vmul.f32 %v453, %v457
        %v459 = vpack.c.bf16 %v458, %v458
        %460 = vrot.lane.b32.xlu0 %v397, 64
        %v461 = vpop.permute.xlu0 %460
        %v463 = vsel %vm401, %v459, 0
        %vm465 = vcmask 1043456
        %v467 = vsel %vm465, %v461, 0
        %469 = vmatprep.subr.bf16.mxu0 0
        %470 = vmatpush1.bf16.msra.mxu0 %v467
        %471 = vmatprep.subr.bf16.mxu0 0
        %472 = vmatpush1.bf16.msra.mxu0 0
        %473 = vmatprep.subr.bf16.mxu0 0
        %474 = vmatpush1.bf16.msra.mxu0 0
        %475 = vmatprep.subr.bf16.mxu0 0
        %476 = vmatpush1.bf16.msra.mxu0 0
        %477 = vmatprep.subr.bf16.mxu0 0
        %478 = vmatpush1.bf16.msra.mxu0 0
        %479 = vmatprep.subr.bf16.mxu0 0
        %480 = vmatpush1.bf16.msra.mxu0 0
        %481 = vmatprep.subr.bf16.mxu0 0
        %482 = vmatpush1.bf16.msra.mxu0 0
        %483 = vmatprep.subr.bf16.mxu0 0
        %484 = vmatpush1.bf16.msra.mxu0 0
        %485 = vmatprep.subr.bf16.mxu0 0
        %486 = vmatpush1.bf16.msra.mxu0 0
        %487 = vmatprep.subr.bf16.mxu0 0
        %488 = vmatpush1.bf16.msra.mxu0 0
        %489 = vmatprep.subr.bf16.mxu0 0
        %490 = vmatpush1.bf16.msra.mxu0 0
        %491 = vmatprep.subr.bf16.mxu0 0
        %492 = vmatpush1.bf16.msra.mxu0 0
        %493 = vmatprep.subr.bf16.mxu0 0
        %494 = vmatpush1.bf16.msra.mxu0 0
        %495 = vmatprep.subr.bf16.mxu0 0
        %496 = vmatpush1.bf16.msra.mxu0 0
        %497 = vmatprep.subr.bf16.mxu0 0
        %498 = vmatpush1.bf16.msra.mxu0 0
        %499 = vmatprep.subr.bf16.mxu0 0
        %500 = vmatpush1.bf16.msra.mxu0 0
        %501 = vmatprep.mubr.bf16.mxu0 0
        %502 = vmatmul.mubr.bf16.gmra.mrb[0].mxu0 %v463
        %v503 = vpop.f32.mrb[0].mxu0
        %v504 = vadd.f32 0.0, %v503
        %v505 = vpop.f32.mrb[0].mxu0
        %v506 = vpop.f32.mrb[0].mxu0
        %v507 = vpop.f32.mrb[0].mxu0
        %508 = vdwg.mxu0
        %510 = vrot.lane.b32.xlu0 %v396, 120
        %v511 = vpop.permute.xlu0 %510
        %512 = vrot.lane.b32.xlu0 %v397, 88
        %v513 = vpop.permute.xlu0 %512
        %v515 = vsel %vm401, %v511, 0
        %v518 = vsel %vm401, %v513, 0
        %520 = vmatprep.subr.bf16.mxu0 0
        %521 = vmatpush1.bf16.xpose.msra.mxu0 %v518
        %522 = vmatprep.subr.bf16.mxu0 0
        %523 = vmatpush1.bf16.xpose.msra.mxu0 0
        %524 = vmatprep.subr.bf16.mxu0 0
        %525 = vmatpush1.bf16.xpose.msra.mxu0 0
        %526 = vmatprep.subr.bf16.mxu0 0
        %527 = vmatpush1.bf16.xpose.msra.mxu0 0
        %528 = vmatprep.subr.bf16.mxu0 0
        %529 = vmatpush1.bf16.xpose.msra.mxu0 0
        %530 = vmatprep.subr.bf16.mxu0 0
        %531 = vmatpush1.bf16.xpose.msra.mxu0 0
        %532 = vmatprep.subr.bf16.mxu0 0
        %533 = vmatpush1.bf16.xpose.msra.mxu0 0
        %534 = vmatprep.subr.bf16.mxu0 0
        %535 = vmatpush1.bf16.xpose.msra.mxu0 0
        %536 = vmatprep.subr.bf16.mxu0 0
        %537 = vmatpush1.bf16.xpose.msra.mxu0 0
        %538 = vmatprep.subr.bf16.mxu0 0
        %539 = vmatpush1.bf16.xpose.msra.mxu0 0
        %540 = vmatprep.subr.bf16.mxu0 0
        %541 = vmatpush1.bf16.xpose.msra.mxu0 0
        %542 = vmatprep.subr.bf16.mxu0 0
        %543 = vmatpush1.bf16.xpose.msra.mxu0 0
        %544 = vmatprep.subr.bf16.mxu0 0
        %545 = vmatpush1.bf16.xpose.msra.mxu0 0
        %546 = vmatprep.subr.bf16.mxu0 0
        %547 = vmatpush1.bf16.xpose.msra.mxu0 0
        %548 = vmatprep.subr.bf16.mxu0 0
        %549 = vmatpush1.bf16.xpose.msra.mxu0 0
        %550 = vmatprep.subr.bf16.mxu0 0
        %551 = vmatpush1.bf16.xpose.msra.mxu0 0
        %552 = vmatprep.mubr.bf16.mxu0 0
        %553 = vmatmul.mubr.bf16.gmra.mrb[0].mxu0 %v515
        %v554 = vpop.f32.mrb[0].mxu0
        %v555 = vadd.f32 0.0, %v554
        %v556 = vpop.f32.mrb[0].mxu0
        %v557 = vpop.f32.mrb[0].mxu0
        %v558 = vpop.f32.mrb[0].mxu0
        %559 = vdwg.mxu0
        %v560 = vsel %vm401, %v555, -inf
        %561 = vmax.xlane.f32.xlu0 %v560
        %v562 = vpop.xlane.xlu0 %561
        %v563 = vsub.f32 %v555, %v562
        %v564 = vmul.f32 %v563, 1.442695
        %v565 = vpow.pop %v564
        %v566 = vsel %vm401, %v565, 0.0
        %567 = vadd.xlane.f32.xlu0 %v566
        %v568 = vpop.xlane.xlu0 %567
        %v569 = vrcp.pop %v568
        %v570 = vmul.f32 %v565, %v569
        %v571 = vpack.c.bf16 %v570, %v570
        %572 = vrot.lane.b32.xlu0 %v397, 56
        %v573 = vpop.permute.xlu0 %572
        %v575 = vsel %vm401, %v571, 0
        %v578 = vsel %vm465, %v573, 0
        %580 = vmatprep.subr.bf16.mxu0 0
        %581 = vmatpush1.bf16.msra.mxu0 %v578
        %582 = vmatprep.subr.bf16.mxu0 0
        %583 = vmatpush1.bf16.msra.mxu0 0
        %584 = vmatprep.subr.bf16.mxu0 0
        %585 = vmatpush1.bf16.msra.mxu0 0
        %586 = vmatprep.subr.bf16.mxu0 0
        %587 = vmatpush1.bf16.msra.mxu0 0
        %588 = vmatprep.subr.bf16.mxu0 0
        %589 = vmatpush1.bf16.msra.mxu0 0
        %590 = vmatprep.subr.bf16.mxu0 0
        %591 = vmatpush1.bf16.msra.mxu0 0
        %592 = vmatprep.subr.bf16.mxu0 0
        %593 = vmatpush1.bf16.msra.mxu0 0
        %594 = vmatprep.subr.bf16.mxu0 0
        %595 = vmatpush1.bf16.msra.mxu0 0
        %596 = vmatprep.subr.bf16.mxu0 0
        %597 = vmatpush1.bf16.msra.mxu0 0
        %598 = vmatprep.subr.bf16.mxu0 0
        %599 = vmatpush1.bf16.msra.mxu0 0
        %600 = vmatprep.subr.bf16.mxu0 0
        %601 = vmatpush1.bf16.msra.mxu0 0
        %602 = vmatprep.subr.bf16.mxu0 0
        %603 = vmatpush1.bf16.msra.mxu0 0
        %604 = vmatprep.subr.bf16.mxu0 0
        %605 = vmatpush1.bf16.msra.mxu0 0
        %606 = vmatprep.subr.bf16.mxu0 0
        %607 = vmatpush1.bf16.msra.mxu0 0
        %608 = vmatprep.subr.bf16.mxu0 0
        %609 = vmatpush1.bf16.msra.mxu0 0
        %610 = vmatprep.subr.bf16.mxu0 0
        %611 = vmatpush1.bf16.msra.mxu0 0
        %612 = vmatprep.mubr.bf16.mxu0 0
        %613 = vmatmul.mubr.bf16.gmra.mrb[0].mxu0 %v575
        %v614 = vpop.f32.mrb[0].mxu0
        %v615 = vadd.f32 0.0, %v614
        %v616 = vpop.f32.mrb[0].mxu0
        %v617 = vpop.f32.mrb[0].mxu0
        %v618 = vpop.f32.mrb[0].mxu0
        %619 = vdwg.mxu0
        %620 = vrot.lane.b32.xlu0 %v396, 112
        %v621 = vpop.permute.xlu0 %620
        %622 = vrot.lane.b32.xlu0 %v397, 80
        %v623 = vpop.permute.xlu0 %622
        %v625 = vsel %vm401, %v621, 0
        %v628 = vsel %vm401, %v623, 0
        %630 = vmatprep.subr.bf16.mxu0 0
        %631 = vmatpush1.bf16.xpose.msra.mxu0 %v628
        %632 = vmatprep.subr.bf16.mxu0 0
        %633 = vmatpush1.bf16.xpose.msra.mxu0 0
        %634 = vmatprep.subr.bf16.mxu0 0
        %635 = vmatpush1.bf16.xpose.msra.mxu0 0
        %636 = vmatprep.subr.bf16.mxu0 0
        %637 = vmatpush1.bf16.xpose.msra.mxu0 0
        %638 = vmatprep.subr.bf16.mxu0 0
        %639 = vmatpush1.bf16.xpose.msra.mxu0 0
        %640 = vmatprep.subr.bf16.mxu0 0
        %641 = vmatpush1.bf16.xpose.msra.mxu0 0
        %642 = vmatprep.subr.bf16.mxu0 0
        %643 = vmatpush1.bf16.xpose.msra.mxu0 0
        %644 = vmatprep.subr.bf16.mxu0 0
        %645 = vmatpush1.bf16.xpose.msra.mxu0 0
        %646 = vmatprep.subr.bf16.mxu0 0
        %647 = vmatpush1.bf16.xpose.msra.mxu0 0
        %648 = vmatprep.subr.bf16.mxu0 0
        %649 = vmatpush1.bf16.xpose.msra.mxu0 0
        %650 = vmatprep.subr.bf16.mxu0 0
        %651 = vmatpush1.bf16.xpose.msra.mxu0 0
        %652 = vmatprep.subr.bf16.mxu0 0
        %653 = vmatpush1.bf16.xpose.msra.mxu0 0
        %654 = vmatprep.subr.bf16.mxu0 0
        %655 = vmatpush1.bf16.xpose.msra.mxu0 0
        %656 = vmatprep.subr.bf16.mxu0 0
        %657 = vmatpush1.bf16.xpose.msra.mxu0 0
        %658 = vmatprep.subr.bf16.mxu0 0
        %659 = vmatpush1.bf16.xpose.msra.mxu0 0
        %660 = vmatprep.subr.bf16.mxu0 0
        %661 = vmatpush1.bf16.xpose.msra.mxu0 0
        %662 = vmatprep.mubr.bf16.mxu0 0
        %663 = vmatmul.mubr.bf16.gmra.mrb[0].mxu0 %v625
        %v664 = vpop.f32.mrb[0].mxu0
        %v665 = vadd.f32 0.0, %v664
        %v666 = vpop.f32.mrb[0].mxu0
        %v667 = vpop.f32.mrb[0].mxu0
        %v668 = vpop.f32.mrb[0].mxu0
        %669 = vdwg.mxu0
        %v670 = vsel %vm401, %v665, -inf
        %671 = vmax.xlane.f32.xlu0 %v670
        %v672 = vpop.xlane.xlu0 %671
        %v673 = vsub.f32 %v665, %v672
        %v674 = vmul.f32 %v673, 1.442695
        %v675 = vpow.pop %v674
        %v676 = vsel %vm401, %v675, 0.0
        %677 = vadd.xlane.f32.xlu0 %v676
        %v678 = vpop.xlane.xlu0 %677
        %v679 = vrcp.pop %v678
        %v680 = vmul.f32 %v675, %v679
        %v681 = vpack.c.bf16 %v680, %v680
        %682 = vrot.lane.b32.xlu0 %v397, 48
        %v683 = vpop.permute.xlu0 %682
        %v685 = vsel %vm401, %v681, 0
        %v688 = vsel %vm465, %v683, 0
        %690 = vmatprep.subr.bf16.mxu0 0
        %691 = vmatpush1.bf16.msra.mxu0 %v688
        %692 = vmatprep.subr.bf16.mxu0 0
        %693 = vmatpush1.bf16.msra.mxu0 0
        %694 = vmatprep.subr.bf16.mxu0 0
        %695 = vmatpush1.bf16.msra.mxu0 0
        %696 = vmatprep.subr.bf16.mxu0 0
        %697 = vmatpush1.bf16.msra.mxu0 0
        %698 = vmatprep.subr.bf16.mxu0 0
        %699 = vmatpush1.bf16.msra.mxu0 0
        %700 = vmatprep.subr.bf16.mxu0 0
        %701 = vmatpush1.bf16.msra.mxu0 0
        %702 = vmatprep.subr.bf16.mxu0 0
        %703 = vmatpush1.bf16.msra.mxu0 0
        %704 = vmatprep.subr.bf16.mxu0 0
        %705 = vmatpush1.bf16.msra.mxu0 0
        %706 = vmatprep.subr.bf16.mxu0 0
        %707 = vmatpush1.bf16.msra.mxu0 0
        %708 = vmatprep.subr.bf16.mxu0 0
        %709 = vmatpush1.bf16.msra.mxu0 0
        %710 = vmatprep.subr.bf16.mxu0 0
        %711 = vmatpush1.bf16.msra.mxu0 0
        %712 = vmatprep.subr.bf16.mxu0 0
        %713 = vmatpush1.bf16.msra.mxu0 0
        %714 = vmatprep.subr.bf16.mxu0 0
        %715 = vmatpush1.bf16.msra.mxu0 0
        %716 = vmatprep.subr.bf16.mxu0 0
        %717 = vmatpush1.bf16.msra.mxu0 0
        %718 = vmatprep.subr.bf16.mxu0 0
        %719 = vmatpush1.bf16.msra.mxu0 0
        %720 = vmatprep.subr.bf16.mxu0 0
        %721 = vmatpush1.bf16.msra.mxu0 0
        %722 = vmatprep.mubr.bf16.mxu0 0
        %723 = vmatmul.mubr.bf16.gmra.mrb[0].mxu0 %v685
        %v724 = vpop.f32.mrb[0].mxu0
        %v725 = vadd.f32 0.0, %v724
        %v726 = vpop.f32.mrb[0].mxu0
        %v727 = vpop.f32.mrb[0].mxu0
        %v728 = vpop.f32.mrb[0].mxu0
        %729 = vdwg.mxu0
        %730 = vrot.lane.b32.xlu0 %v396, 104
        %v731 = vpop.permute.xlu0 %730
        %732 = vrot.lane.b32.xlu0 %v397, 72
        %v733 = vpop.permute.xlu0 %732
        %v735 = vsel %vm401, %v731, 0
        %v738 = vsel %vm401, %v733, 0
        %740 = vmatprep.subr.bf16.mxu0 0
        %741 = vmatpush1.bf16.xpose.msra.mxu0 %v738
        %742 = vmatprep.subr.bf16.mxu0 0
        %743 = vmatpush1.bf16.xpose.msra.mxu0 0
        %744 = vmatprep.subr.bf16.mxu0 0
        %745 = vmatpush1.bf16.xpose.msra.mxu0 0
        %746 = vmatprep.subr.bf16.mxu0 0
        %747 = vmatpush1.bf16.xpose.msra.mxu0 0
        %748 = vmatprep.subr.bf16.mxu0 0
        %749 = vmatpush1.bf16.xpose.msra.mxu0 0
        %750 = vmatprep.subr.bf16.mxu0 0
        %751 = vmatpush1.bf16.xpose.msra.mxu0 0
        %752 = vmatprep.subr.bf16.mxu0 0
        %753 = vmatpush1.bf16.xpose.msra.mxu0 0
        %754 = vmatprep.subr.bf16.mxu0 0
        %755 = vmatpush1.bf16.xpose.msra.mxu0 0
        %756 = vmatprep.subr.bf16.mxu0 0
        %757 = vmatpush1.bf16.xpose.msra.mxu0 0
        %758 = vmatprep.subr.bf16.mxu0 0
        %759 = vmatpush1.bf16.xpose.msra.mxu0 0
        %760 = vmatprep.subr.bf16.mxu0 0
        %761 = vmatpush1.bf16.xpose.msra.mxu0 0
        %762 = vmatprep.subr.bf16.mxu0 0
        %763 = vmatpush1.bf16.xpose.msra.mxu0 0
        %764 = vmatprep.subr.bf16.mxu0 0
        %765 = vmatpush1.bf16.xpose.msra.mxu0 0
        %766 = vmatprep.subr.bf16.mxu0 0
        %767 = vmatpush1.bf16.xpose.msra.mxu0 0
        %768 = vmatprep.subr.bf16.mxu0 0
        %769 = vmatpush1.bf16.xpose.msra.mxu0 0
        %770 = vmatprep.subr.bf16.mxu0 0
        %771 = vmatpush1.bf16.xpose.msra.mxu0 0
        %772 = vmatprep.mubr.bf16.mxu0 0
        %773 = vmatmul.mubr.bf16.gmra.mrb[0].mxu0 %v735
        %v774 = vpop.f32.mrb[0].mxu0
        %v775 = vadd.f32 0.0, %v774
        %v776 = vpop.f32.mrb[0].mxu0
        %v777 = vpop.f32.mrb[0].mxu0
        %v778 = vpop.f32.mrb[0].mxu0
        %779 = vdwg.mxu0
        %v780 = vsel %vm401, %v775, -inf
        %781 = vmax.xlane.f32.xlu0 %v780
        %v782 = vpop.xlane.xlu0 %781
        %v783 = vsub.f32 %v775, %v782
        %v784 = vmul.f32 %v783, 1.442695
        %v785 = vpow.pop %v784
        %v786 = vsel %vm401, %v785, 0.0
        %787 = vadd.xlane.f32.xlu0 %v786
        %v788 = vpop.xlane.xlu0 %787
        %v789 = vrcp.pop %v788
        %v790 = vmul.f32 %v785, %v789
        %v791 = vpack.c.bf16 %v790, %v790
        %792 = vrot.lane.b32.xlu0 %v397, 40
        %v793 = vpop.permute.xlu0 %792
        %v795 = vsel %vm401, %v791, 0
        %v798 = vsel %vm465, %v793, 0
        %800 = vmatprep.subr.bf16.mxu0 0
        %801 = vmatpush1.bf16.msra.mxu0 %v798
        %802 = vmatprep.subr.bf16.mxu0 0
        %803 = vmatpush1.bf16.msra.mxu0 0
        %804 = vmatprep.subr.bf16.mxu0 0
        %805 = vmatpush1.bf16.msra.mxu0 0
        %806 = vmatprep.subr.bf16.mxu0 0
        %807 = vmatpush1.bf16.msra.mxu0 0
        %808 = vmatprep.subr.bf16.mxu0 0
        %809 = vmatpush1.bf16.msra.mxu0 0
        %810 = vmatprep.subr.bf16.mxu0 0
        %811 = vmatpush1.bf16.msra.mxu0 0
        %812 = vmatprep.subr.bf16.mxu0 0
        %813 = vmatpush1.bf16.msra.mxu0 0
        %814 = vmatprep.subr.bf16.mxu0 0
        %815 = vmatpush1.bf16.msra.mxu0 0
        %816 = vmatprep.subr.bf16.mxu0 0
        %817 = vmatpush1.bf16.msra.mxu0 0
        %818 = vmatprep.subr.bf16.mxu0 0
        %819 = vmatpush1.bf16.msra.mxu0 0
        %820 = vmatprep.subr.bf16.mxu0 0
        %821 = vmatpush1.bf16.msra.mxu0 0
        %822 = vmatprep.subr.bf16.mxu0 0
        %823 = vmatpush1.bf16.msra.mxu0 0
        %824 = vmatprep.subr.bf16.mxu0 0
        %825 = vmatpush1.bf16.msra.mxu0 0
        %826 = vmatprep.subr.bf16.mxu0 0
        %827 = vmatpush1.bf16.msra.mxu0 0
        %828 = vmatprep.subr.bf16.mxu0 0
        %829 = vmatpush1.bf16.msra.mxu0 0
        %830 = vmatprep.subr.bf16.mxu0 0
        %831 = vmatpush1.bf16.msra.mxu0 0
        %832 = vmatprep.mubr.bf16.mxu0 0
        %833 = vmatmul.mubr.bf16.gmra.mrb[0].mxu0 %v795
        %v834 = vpop.f32.mrb[0].mxu0
        %v835 = vadd.f32 0.0, %v834
        %v836 = vpop.f32.mrb[0].mxu0
        %v837 = vpop.f32.mrb[0].mxu0
        %v838 = vpop.f32.mrb[0].mxu0
        %839 = vdwg.mxu0
        %841 = vrot.lane.b32.xlu0 %v615, 8
        %v842 = vpop.permute.xlu0 %841
        %845 = vrot.lane.b32.xlu0 %v725, 16
        %v846 = vpop.permute.xlu0 %845
        %849 = vrot.lane.b32.xlu0 %v835, 24
        %v850 = vpop.permute.xlu0 %849
        %v852 = vsel %vm401, %v504, %v842
        %vm853 = vcmask 130048
        %v854 = vsel %vm853, %v852, %v846
        %vm855 = vcmask 195584
        %v856 = vsel %vm855, %v854, %v850
        %v857 = vpack.c.bf16 %v856, %v856
        %v858 = vld [vmem:[%s3] sm:$0xf]
        %v859 = vld [vmem:[%s3 + $0x4] sm:$0xf]
        %v860 = vld [vmem:[%s3 + $0x8] sm:$0xf]
        %v861 = vld [vmem:[%s3 + $0xc] sm:$0xf]
        %v862 = vld [vmem:[#allocation4] sm:$0x1]
        %v864 = vlaneseq
        %v865 = vshrl.u32 %v864, 7
        %v866 = vsub.s32 0, %v865
        %v867 = vrot.slane %v862, %v866
        %v873 = vunpack.c.l.b16 %v858
        %v874 = vunpack.c.l.b16 %v859
        %v875 = vunpack.c.l.b16 %v860
        %v876 = vunpack.c.l.b16 %v861
        %v877 = vpack.c.b16 %v874, %v873
        %v878 = vpack.c.b16 %v876, %v875
        %v882 = vsel %vm351, %v857, 0
        %884 = vmatprep.subr.bf16.mxu0 0
        %885 = vmatpush1.bf16.msra.mxu0 %v877
        %886 = vmatprep.subr.bf16.mxu0 0
        %887 = vmatpush1.bf16.msra.mxu0 %v878
        %888 = vmatprep.subr.bf16.mxu0 0
        %889 = vmatpush1.bf16.msra.mxu0 0
        %890 = vmatprep.subr.bf16.mxu0 0
        %891 = vmatpush1.bf16.msra.mxu0 0
        %892 = vmatprep.subr.bf16.mxu0 0
        %893 = vmatpush1.bf16.msra.mxu0 0
        %894 = vmatprep.subr.bf16.mxu0 0
        %895 = vmatpush1.bf16.msra.mxu0 0
        %896 = vmatprep.subr.bf16.mxu0 0
        %897 = vmatpush1.bf16.msra.mxu0 0
        %898 = vmatprep.subr.bf16.mxu0 0
        %899 = vmatpush1.bf16.msra.mxu0 0
        %900 = vmatprep.subr.bf16.mxu0 0
        %901 = vmatpush1.bf16.msra.mxu0 0
        %902 = vmatprep.subr.bf16.mxu0 0
        %903 = vmatpush1.bf16.msra.mxu0 0
        %904 = vmatprep.subr.bf16.mxu0 0
        %905 = vmatpush1.bf16.msra.mxu0 0
        %906 = vmatprep.subr.bf16.mxu0 0
        %907 = vmatpush1.bf16.msra.mxu0 0
        %908 = vmatprep.subr.bf16.mxu0 0
        %909 = vmatpush1.bf16.msra.mxu0 0
        %910 = vmatprep.subr.bf16.mxu0 0
        %911 = vmatpush1.bf16.msra.mxu0 0
        %912 = vmatprep.subr.bf16.mxu0 0
        %913 = vmatpush1.bf16.msra.mxu0 0
        %914 = vmatprep.subr.bf16.mxu0 0
        %915 = vmatpush1.bf16.msra.mxu0 0
        %916 = vmatprep.mubr.bf16.mxu0 0
        %917 = vmatmul.mubr.bf16.gmra.mrb[0].mxu0 %v882
        %v918 = vpop.f32.mrb[0].mxu0
        %v919 = vadd.f32 %v867, %v918
        %v920 = vpop.f32.mrb[0].mxu0
        %v921 = vpop.f32.mrb[0].mxu0
        %v922 = vpop.f32.mrb[0].mxu0
        %923 = vdwg.mxu0
        %v924 = vadd.f32 %v326, %v919
        %v925 = vld [vmem:[#allocation6] sm:$0x1]
        %v926 = vld [vmem:[#allocation7] sm:$0x1]
        %v927 = vsel %vm351, %v924, 0.0
        %928 = vadd.xlane.f32.xlu0 %v927
        %v929 = vpop.xlane.xlu0 %928
        %v930 = vrcp.pop 32.0
        %v931 = vmul.f32 %v929, %v930
        %v932 = vsub.f32 %v924, %v931
        %v933 = vmul.f32 %v932, %v932
        %v934 = vsel %vm351, %v933, 0.0
        %935 = vadd.xlane.f32.xlu0 %v934
        %v936 = vpop.xlane.xlu0 %935
        %v937 = vmul.f32 %v936, %v930
        %v938 = vadd.f32 %v937, 1e-05
        %v939 = vrsqrt.pop %v938
        %v940 = vmul.f32 %v932, %v939
        %v942 = vlaneseq
        %v943 = vshrl.u32 %v942, 7
        %v944 = vsub.s32 0, %v943
        %v945 = vrot.slane %v925, %v944
        %v947 = vmul.f32 %v940, %v945
        %v949 = vlaneseq
        %v950 = vshrl.u32 %v949, 7
        %v951 = vsub.s32 0, %v950
        %v952 = vrot.slane %v926, %v951
        %v954 = vadd.f32 %v947, %v952
        %955 = vst.msk [vmem:[%s324] sm:$0xff] %vm351, %v954
        %p956 = scmp.lt.s32.totalorder %s21, 1
        %s957 = scalar_select %p956, %s21, 1
        %s958 = smul.addr %s957, 8
        %s959 = scalar_lea.vmem %s7, %s958
        // Predicated region
        $region65: #{transformer_encoder_layer.2} parent=47 // pred_check
          %p960 = pneg %p191
        $region66: #{transformer_encoder_layer.2} parent=47 // pred_check_branch
          %962 = sbr.rel (%p960) target = $region68
        $region67: #{transformer_encoder_layer.2} parent=47 // pred_region
          _
        $region68: #{transformer_encoder_layer.2} parent=47 // pred_fallthru
          _
      $region48: #{transformer_encoder_layer.2} parent=5 // pred_fallthru
        _
      %p963 = scmp.le.s32.totalorder 2, %s16
      // Predicated region
      $region69: #{transformer_encoder_layer.2} parent=5 // pred_check
        %p964 = pneg %p963
      $region70: #{transformer_encoder_layer.2} parent=5 // pred_check_branch
        %966 = sbr.rel (%p964) target = $region72
      $region71: #{transformer_encoder_layer.2} parent=5 // pred_region
        %s967 = ssub.s32 %s16, 2
        // Predicated region
        $region73: #{transformer_encoder_layer.2} parent=71 // pred_check
          %p968 = pneg %p197
        $region74: #{transformer_encoder_layer.2} parent=71 // pred_check_branch
          %970 = sbr.rel (%p968) target = $region76
        $region75: #{transformer_encoder_layer.2} parent=71 // pred_region
          %p971 = scmp.lt.s32.totalorder %s22, 1
          %s972 = scalar_select %p971, %s22, 1
          %s973 = smul.addr %s972, 8
          %s974 = scalar_lea.vmem %s7, %s973
        $region76: #{transformer_encoder_layer.2} parent=71 // pred_fallthru
          _
      $region72: #{transformer_encoder_layer.2} parent=5 // pred_fallthru
        _
    $region6: #{transformer_encoder_layer.2} parent=1 // loop_footer
      %s20 = sadd.s32 1, %s16
    $region7: #{transformer_encoder_layer.2} parent=1 // loop_footer_branch
      %15 = sbr.rel target = $region3
    $region8: #{transformer_encoder_layer.2} parent=1 // loop_exit
      _
    %975 = vsyncpa [#allocation3], 1
    %s976 = scalar_lea.sflag [#allocation3], 1
    %977 = vsyncpa %s976, 1
    %978 = vsyncpa [#allocation5], 1
    %979 = vsyncpa [#allocation8], 1

// kernel: transformer_encoder_layer.3
$region0: #{transformer_encoder_layer.3}
  #allocation0 [shape = 'u32[]', space=smem, size = 0x4, offset = 0x4, fixed_abs, tag = 'smem constant byte address 0x4 - core index']
  #allocation1 [shape = 'u32[144,128]{1,0:T(1,128)}', space=vmem, size = 0x12000, scoped, tag = 'internal scratch']
  #allocation2 [shape = 'f32[8,2,192]{2,1,0:T(2,128)}', space=vmem, size = 0x4000, scoped, tag = 'scratch operand']
  #allocation3 [shape = 'f32[8,2,192]{2,1,0:T(2,128)}', space=vmem, size = 0x4000, scoped, tag = 'scratch operand']
  #allocation4 [shape = 'f32[8,2,64]{2,1,0:T(2,128)}', space=vmem, size = 0x2000, scoped, tag = 'scratch operand']
  #allocation5 [shape = 'f32[8,2,64]{2,1,0:T(2,128)}', space=vmem, size = 0x2000, scoped, tag = 'scratch operand']
  %s0 = inlined_call_operand.hbm [shape: f32[8,2,32], index: 0, kind: input, shape index: {}, may-alias: {0,14}]
  %s1 = inlined_call_operand.vmem [shape: bf16[32,192], index: 1, kind: input, shape index: {}]
  %s2 = inlined_call_operand.vmem [shape: bf16[64,192], index: 2, kind: input, shape index: {}]
  %s3 = inlined_call_operand.vmem [shape: f32[1,192], index: 3, kind: input, shape index: {}]
  %s4 = inlined_call_operand.vmem [shape: f32[1,192], index: 4, kind: input, shape index: {}]
  %s5 = inlined_call_operand.vmem [shape: bf16[32,192], index: 5, kind: input, shape index: {}]
  %s6 = inlined_call_operand.vmem [shape: bf16[64,192], index: 6, kind: input, shape index: {}]
  %s7 = inlined_call_operand.vmem [shape: f32[1,192], index: 7, kind: input, shape index: {}]
  %s8 = inlined_call_operand.hbm [shape: f32[1,192], index: 8, kind: input, shape index: {}]
  %s9 = inlined_call_operand.vmem [shape: bf16[64,32], index: 9, kind: input, shape index: {}]
  %s10 = inlined_call_operand.vmem [shape: bf16[64,32], index: 10, kind: input, shape index: {}]
  %s11 = inlined_call_operand.hbm [shape: f32[1,32], index: 11, kind: input, shape index: {}]
  %s12 = inlined_call_operand.vmem [shape: f32[1,32], index: 12, kind: input, shape index: {}]
  %s13 = inlined_call_operand.vmem [shape: f32[1,32], index: 13, kind: input, shape index: {}]
  %s14 = inlined_call_operand.hbm [shape: f32[8,2,32], index: 14, kind: output, shape index: {}, may-alias: {0,14}]
  %s15 = sld [smem:[#allocation0]]
  $region85: #{transformer_encoder_layer.3} parent=0
    _
  %s17 = ssub.s32 1, %s15
  %s18 = scalar_select 0, %s17, %s15
  $region1: #{transformer_encoder_layer.3} parent=0
    #allocation6 [shape = 'u8[8192]{0}', space=vmem, size = 0x2000, scoped, tag = 'input window, operand 0, single buffered']
    #allocation7 [shape = 's32[1]{0}', space=sflag, size = 0x4, scoped, tag = 'scoped memory for transformer_encoder_layer.3']
    #allocation8 [shape = 's32[1]{0}', space=sflag, size = 0x4, scoped, tag = 'scoped memory for transformer_encoder_layer.3']
    #allocation9 [shape = 'u8[1024]{0}', space=vmem, size = 0x400, scoped, tag = 'input window, operand 8, single buffered']
    #allocation10 [shape = 's32[1]{0}', space=sflag, size = 0x4, scoped, tag = 'scoped memory for transformer_encoder_layer.3']
    #allocation11 [shape = 'u8[512]{0}', space=vmem, size = 0x400, scoped, tag = 'input window, operand 11, single buffered']
    #allocation12 [shape = 'u8[8192]{0}', space=vmem, size = 0x2000, scoped, tag = 'output window, operand 0, single buffered']
    %19 = vsyncpa [#allocation7], 0
    %20 = vsyncpa [#allocation10], 0
    %21 = vsyncpa [#allocation8], 0
    // Predicated region
    $region2: #{transformer_encoder_layer.3} parent=1 // pred_check
      _
    $region3: #{transformer_encoder_layer.3} parent=1 // pred_check_branch
      %23 = sbr.rel (0) target = $region5
    $region4: #{transformer_encoder_layer.3} parent=1 // pred_region
      %s25 = ssub.s32 256, 256
      %26 = vsyncadd [#allocation7], %s25
      %s27 = sshll.u32 [#allocation6], 4
      %s28 = int_to_ptr.vmem [resolvable:$true] %s27
      %33 = dma.hbm_to_vmem [thread:$0]  %s0, 256, %s28, [#allocation7], 32, 32, 2
    $region5: #{transformer_encoder_layer.3} parent=1 // pred_fallthru
      _
    // Predicated region
    $region6: #{transformer_encoder_layer.3} parent=1 // pred_check
      _
    $region7: #{transformer_encoder_layer.3} parent=1 // pred_check_branch
      %35 = sbr.rel (0) target = $region9
    $region8: #{transformer_encoder_layer.3} parent=1 // pred_region
      _
    $region9: #{transformer_encoder_layer.3} parent=1 // pred_fallthru
      _
    // Predicated region
    $region10: #{transformer_encoder_layer.3} parent=1 // pred_check
      _
    $region11: #{transformer_encoder_layer.3} parent=1 // pred_check_branch
      %37 = sbr.rel (0) target = $region13
    $region12: #{transformer_encoder_layer.3} parent=1 // pred_region
      _
    $region13: #{transformer_encoder_layer.3} parent=1 // pred_fallthru
      _
    // Predicated region
    $region14: #{transformer_encoder_layer.3} parent=1 // pred_check
      _
    $region15: #{transformer_encoder_layer.3} parent=1 // pred_check_branch
      %39 = sbr.rel (0) target = $region17
    $region16: #{transformer_encoder_layer.3} parent=1 // pred_region
      _
    $region17: #{transformer_encoder_layer.3} parent=1 // pred_fallthru
      _
    // Predicated region
    $region18: #{transformer_encoder_layer.3} parent=1 // pred_check
      _
    $region19: #{transformer_encoder_layer.3} parent=1 // pred_check_branch
      %41 = sbr.rel (0) target = $region21
    $region20: #{transformer_encoder_layer.3} parent=1 // pred_region
      _
    $region21: #{transformer_encoder_layer.3} parent=1 // pred_fallthru
      _
    // Predicated region
    $region22: #{transformer_encoder_layer.3} parent=1 // pred_check
      _
    $region23: #{transformer_encoder_layer.3} parent=1 // pred_check_branch
      %43 = sbr.rel (0) target = $region25
    $region24: #{transformer_encoder_layer.3} parent=1 // pred_region
      _
    $region25: #{transformer_encoder_layer.3} parent=1 // pred_fallthru
      _
    // Predicated region
    $region26: #{transformer_encoder_layer.3} parent=1 // pred_check
      _
    $region27: #{transformer_encoder_layer.3} parent=1 // pred_check_branch
      %45 = sbr.rel (0) target = $region29
    $region28: #{transformer_encoder_layer.3} parent=1 // pred_region
      _
    $region29: #{transformer_encoder_layer.3} parent=1 // pred_fallthru
      _
    // Predicated region
    $region30: #{transformer_encoder_layer.3} parent=1 // pred_check
      _
    $region31: #{transformer_encoder_layer.3} parent=1 // pred_check_branch
      %47 = sbr.rel (0) target = $region33
    $region32: #{transformer_encoder_layer.3} parent=1 // pred_region
      _
    $region33: #{transformer_encoder_layer.3} parent=1 // pred_fallthru
      _
    // Predicated region
    $region34: #{transformer_encoder_layer.3} parent=1 // pred_check
      _
    $region35: #{transformer_encoder_layer.3} parent=1 // pred_check_branch
      %49 = sbr.rel (0) target = $region37
    $region36: #{transformer_encoder_layer.3} parent=1 // pred_region
      %s51 = ssub.s32 32, 32
      %52 = vsyncadd [#allocation10], %s51
      %s54 = sshll.u32 [#allocation9], 4
      %s55 = int_to_ptr.vmem [resolvable:$true] %s54
      %57 = dma.hbm_to_vmem [thread:$0]  %s8, 32, %s55, [#allocation10]
    $region37: #{transformer_encoder_layer.3} parent=1 // pred_fallthru
      _
    // Predicated region
    $region38: #{transformer_encoder_layer.3} parent=1 // pred_check
      _
    $region39: #{transformer_encoder_layer.3} parent=1 // pred_check_branch
      %59 = sbr.rel (0) target = $region41
    $region40: #{transformer_encoder_layer.3} parent=1 // pred_region
      _
    $region41: #{transformer_encoder_layer.3} parent=1 // pred_fallthru
      _
    // Predicated region
    $region42: #{transformer_encoder_layer.3} parent=1 // pred_check
      _
    $region43: #{transformer_encoder_layer.3} parent=1 // pred_check_branch
      %61 = sbr.rel (0) target = $region45
    $region44: #{transformer_encoder_layer.3} parent=1 // pred_region
      _
    $region45: #{transformer_encoder_layer.3} parent=1 // pred_fallthru
      _
    // Predicated region
    $region46: #{transformer_encoder_layer.3} parent=1 // pred_check
      _
    $region47: #{transformer_encoder_layer.3} parent=1 // pred_check_branch
      %63 = sbr.rel (0) target = $region49
    $region48: #{transformer_encoder_layer.3} parent=1 // pred_region
      %s65 = ssub.s32 16, 16
      %66 = vsyncadd [#allocation10], %s65
      %s68 = sshll.u32 [#allocation11], 4
      %s69 = int_to_ptr.vmem [resolvable:$true] %s68
      %71 = dma.hbm_to_vmem [thread:$0]  %s11, 16, %s69, [#allocation10]
    $region49: #{transformer_encoder_layer.3} parent=1 // pred_fallthru
      _
    // Predicated region
    $region50: #{transformer_encoder_layer.3} parent=1 // pred_check
      _
    $region51: #{transformer_encoder_layer.3} parent=1 // pred_check_branch
      %73 = sbr.rel (0) target = $region53
    $region52: #{transformer_encoder_layer.3} parent=1 // pred_region
      _
    $region53: #{transformer_encoder_layer.3} parent=1 // pred_fallthru
      _
    // Predicated region
    $region54: #{transformer_encoder_layer.3} parent=1 // pred_check
      _
    $region55: #{transformer_encoder_layer.3} parent=1 // pred_check_branch
      %75 = sbr.rel (0) target = $region57
    $region56: #{transformer_encoder_layer.3} parent=1 // pred_region
      _
    $region57: #{transformer_encoder_layer.3} parent=1 // pred_fallthru
      _
    // Predicated region
    $region58: #{transformer_encoder_layer.3} parent=1 // pred_check
      _
    $region59: #{transformer_encoder_layer.3} parent=1 // pred_check_branch
      %77 = sbr.rel (0) target = $region61
    $region60: #{transformer_encoder_layer.3} parent=1 // pred_region
      %78 = dma.done [#allocation7], 256
    $region61: #{transformer_encoder_layer.3} parent=1 // pred_fallthru
      _
    // Predicated region
    $region62: #{transformer_encoder_layer.3} parent=1 // pred_check
      _
    $region63: #{transformer_encoder_layer.3} parent=1 // pred_check_branch
      %80 = sbr.rel (0) target = $region65
    $region64: #{transformer_encoder_layer.3} parent=1 // pred_region
      %81 = dma.done [#allocation10], 32
    $region65: #{transformer_encoder_layer.3} parent=1 // pred_fallthru
      _
    // Predicated region
    $region66: #{transformer_encoder_layer.3} parent=1 // pred_check
      _
    $region67: #{transformer_encoder_layer.3} parent=1 // pred_check_branch
      %83 = sbr.rel (0) target = $region69
    $region68: #{transformer_encoder_layer.3} parent=1 // pred_region
      %84 = dma.done [#allocation10], 16
    $region69: #{transformer_encoder_layer.3} parent=1 // pred_fallthru
      _
    %v86 = vld [vmem:[#allocation6] sm:$0x3]
    %v87 = vld [vmem:[#allocation6 + $0x2] sm:$0x3]
    %v88 = vld [vmem:[#allocation6 + $0x4] sm:$0x3]
    %v89 = vld [vmem:[#allocation6 + $0x6] sm:$0x3]
    %v90 = vld [vmem:[#allocation6 + $0x8] sm:$0x3]
    %v91 = vld [vmem:[#allocation6 + $0xa] sm:$0x3]
    %v92 = vld [vmem:[#allocation6 + $0xc] sm:$0x3]
    %v93 = vld [vmem:[#allocation6 + $0xe] sm:$0x3]
    %v102 = vcombine.low %v86, %v87
    %v103 = vcombine.low %v88, %v89
    %v105 = vunpack.c.l.s4 1983009808
    %v106 = vunpack.c.0.s8 %v105
    %v107 = vlaneseq
    %v108 = vshrl.u32 %v107, 7
    %v109 = vsub.s32 %v106, %v108
    %v110 = vrot.slane %v102, %v109
    %v112 = vunpack.c.l.s4 1983009808
    %v113 = vunpack.c.0.s8 %v112
    %v114 = vlaneseq
    %v115 = vshrl.u32 %v114, 7
    %v116 = vsub.s32 %v113, %v115
    %v117 = vrot.slane %v103, %v116
    %v118 = vcombine.low %v110, %v117
    %v119 = vcombine.low %v90, %v91
    %v120 = vcombine.low %v92, %v93
    %v122 = vunpack.c.l.s4 1983009808
    %v123 = vunpack.c.0.s8 %v122
    %v124 = vlaneseq
    %v125 = vshrl.u32 %v124, 7
    %v126 = vsub.s32 %v123, %v125
    %v127 = vrot.slane %v119, %v126
    %v129 = vunpack.c.l.s4 1983009808
    %v130 = vunpack.c.0.s8 %v129
    %v131 = vlaneseq
    %v132 = vshrl.u32 %v131, 7
    %v133 = vsub.s32 %v130, %v132
    %v134 = vrot.slane %v120, %v133
    %v135 = vcombine.low %v127, %v134
    %v138 = vpack.c.bf16 %v135, %v118
    %v139 = vld [vmem:[%s1] sm:$0xff]
    %v140 = vld [vmem:[%s1 + $0x8] sm:$0xff]
    %v141 = vld [vmem:[%s1 + $0x10] sm:$0xff]
    %v142 = vld [vmem:[%s1 + $0x18] sm:$0xff]
    %v143 = vld [vmem:[%s3] sm:$0x3]
    %v145 = vlaneseq
    %v146 = vshrl.u32 %v145, 7
    %v147 = vsub.s32 0, %v146
    %v148 = vrot.slane %v143, %v147
    %v149 = vlaneseq
    %v150 = vshrl.u32 %v149, 7
    %v151 = vsub.s32 1, %v150
    %v152 = vrot.slane %v143, %v151
    %v159 = vunpack.c.l.b16 %v139
    %v160 = vunpack.c.h.b16 %v139
    %v161 = vunpack.c.l.b16 %v140
    %v162 = vunpack.c.h.b16 %v140
    %v163 = vunpack.c.l.b16 %v141
    %v164 = vunpack.c.h.b16 %v141
    %v165 = vunpack.c.l.b16 %v142
    %v166 = vunpack.c.h.b16 %v142
    %v167 = vpack.c.b16 %v161, %v159
    %v168 = vpack.c.b16 %v162, %v160
    %v169 = vpack.c.b16 %v165, %v163
    %v170 = vpack.c.b16 %v166, %v164
    %vm175 = vcmask 261120
    %v177 = vsel %vm175, %v138, 0
    %179 = vmatprep.subr.bf16.mxu0 %v168
    %180 = vmatpush1.bf16.msra.mxu0 %v167
    %181 = vmatprep.subr.bf16.mxu0 %v170
    %182 = vmatpush1.bf16.msra.mxu0 %v169
    %183 = vmatprep.subr.bf16.mxu0 0
    %184 = vmatpush1.bf16.msra.mxu0 0
    %185 = vmatprep.subr.bf16.mxu0 0
    %186 = vmatpush1.bf16.msra.mxu0 0
    %187 = vmatprep.subr.bf16.mxu0 0
    %188 = vmatpush1.bf16.msra.mxu0 0
    %189 = vmatprep.subr.bf16.mxu0 0
    %190 = vmatpush1.bf16.msra.mxu0 0
    %191 = vmatprep.subr.bf16.mxu0 0
    %192 = vmatpush1.bf16.msra.mxu0 0
    %193 = vmatprep.subr.bf16.mxu0 0
    %194 = vmatpush1.bf16.msra.mxu0 0
    %195 = vmatprep.subr.bf16.mxu0 0
    %196 = vmatpush1.bf16.msra.mxu0 0
    %197 = vmatprep.subr.bf16.mxu0 0
    %198 = vmatpush1.bf16.msra.mxu0 0
    %199 = vmatprep.subr.bf16.mxu0 0
    %200 = vmatpush1.bf16.msra.mxu0 0
    %201 = vmatprep.subr.bf16.mxu0 0
    %202 = vmatpush1.bf16.msra.mxu0 0
    %203 = vmatprep.subr.bf16.mxu0 0
    %204 = vmatpush1.bf16.msra.mxu0 0
    %205 = vmatprep.subr.bf16.mxu0 0
    %206 = vmatpush1.bf16.msra.mxu0 0
    %207 = vmatprep.subr.bf16.mxu0 0
    %208 = vmatpush1.bf16.msra.mxu0 0
    %209 = vmatprep.subr.bf16.mxu0 0
    %210 = vmatpush1.bf16.msra.mxu0 0
    %211 = vmatprep.mubr.bf16.mxu0 0
    %212 = vmatmul.mubr.bf16.gmra.mrb[0].mxu0 %v177
    %v213 = vpop.f32.mrb[0].mxu0
    %v214 = vadd.f32 %v148, %v213
    %v215 = vpop.f32.mrb[0].mxu0
    %v216 = vadd.f32 %v152, %v215
    %v217 = vpop.f32.mrb[0].mxu0
    %v218 = vadd.f32 %v148, %v217
    %v219 = vpop.f32.mrb[0].mxu0
    %v220 = vadd.f32 %v152, %v219
    %221 = vdwg.mxu0
    %v226 = vcombine.low %v214, %v216
    %v227 = vcombine.high %v214, %v216
    %v229 = vunpack.c.l.s4 1983009808
    %v230 = vunpack.c.0.s8 %v229
    %v231 = vlaneseq
    %v232 = vshrl.u32 %v231, 7
    %v233 = vsub.s32 %v230, %v232
    %v234 = vrot.slane %v226, %v233
    %v236 = vunpack.c.l.s4 1983009808
    %v237 = vunpack.c.0.s8 %v236
    %v238 = vlaneseq
    %v239 = vshrl.u32 %v238, 7
    %v240 = vsub.s32 %v237, %v239
    %v241 = vrot.slane %v227, %v240
    %v242 = vcombine.high %v234, %v234
    %v243 = vcombine.high %v241, %v241
    %v244 = vcombine.low %v218, %v220
    %v245 = vcombine.high %v218, %v220
    %v247 = vunpack.c.l.s4 1983009808
    %v248 = vunpack.c.0.s8 %v247
    %v249 = vlaneseq
    %v250 = vshrl.u32 %v249, 7
    %v251 = vsub.s32 %v248, %v250
    %v252 = vrot.slane %v244, %v251
    %v254 = vunpack.c.l.s4 1983009808
    %v255 = vunpack.c.0.s8 %v254
    %v256 = vlaneseq
    %v257 = vshrl.u32 %v256, 7
    %v258 = vsub.s32 %v255, %v257
    %v259 = vrot.slane %v245, %v258
    %v260 = vcombine.high %v252, %v252
    %v261 = vcombine.high %v259, %v259
    %vm270 = vcmask 1041408
    %vm271 = vcmask 519170
    %vm272 = vmor %vm271, %vm270
    %273 = vst.msk [vmem:[#allocation2] sm:$0xf] %vm272, %v234
    %274 = vst.msk [vmem:[#allocation2 + $0x4] sm:$0xf] %vm272, %v242
    %275 = vst.msk [vmem:[#allocation2 + $0x8] sm:$0xf] %vm272, %v241
    %276 = vst.msk [vmem:[#allocation2 + $0xc] sm:$0xf] %vm272, %v243
    %277 = vst.msk [vmem:[#allocation2 + $0x10] sm:$0xf] %vm272, %v252
    %278 = vst.msk [vmem:[#allocation2 + $0x14] sm:$0xf] %vm272, %v260
    %279 = vst.msk [vmem:[#allocation2 + $0x18] sm:$0xf] %vm272, %v259
    %280 = vst.msk [vmem:[#allocation2 + $0x1c] sm:$0xf] %vm272, %v261
    %v281 = vld [vmem:[%s5] sm:$0xff]
    %v282 = vld [vmem:[%s5 + $0x8] sm:$0xff]
    %v283 = vld [vmem:[%s5 + $0x10] sm:$0xff]
    %v284 = vld [vmem:[%s5 + $0x18] sm:$0xff]
    %v285 = vld [vmem:[%s7] sm:$0x3]
    %v287 = vlaneseq
    %v288 = vshrl.u32 %v287, 7
    %v289 = vsub.s32 0, %v288
    %v290 = vrot.slane %v285, %v289
    %v291 = vlaneseq
    %v292 = vshrl.u32 %v291, 7
    %v293 = vsub.s32 1, %v292
    %v294 = vrot.slane %v285, %v293
    %v301 = vunpack.c.l.b16 %v281
    %v302 = vunpack.c.h.b16 %v281
    %v303 = vunpack.c.l.b16 %v282
    %v304 = vunpack.c.h.b16 %v282
    %v305 = vunpack.c.l.b16 %v283
    %v306 = vunpack.c.h.b16 %v283
    %v307 = vunpack.c.l.b16 %v284
    %v308 = vunpack.c.h.b16 %v284
    %v309 = vpack.c.b16 %v303, %v301
    %v310 = vpack.c.b16 %v304, %v302
    %v311 = vpack.c.b16 %v307, %v305
    %v312 = vpack.c.b16 %v308, %v306
    %317 = vmatprep.subr.bf16.mxu0 %v310
    %318 = vmatpush1.bf16.msra.mxu0 %v309
    %319 = vmatprep.subr.bf16.mxu0 %v312
    %320 = vmatpush1.bf16.msra.mxu0 %v311
    %321 = vmatprep.subr.bf16.mxu0 0
    %322 = vmatpush1.bf16.msra.mxu0 0
    %323 = vmatprep.subr.bf16.mxu0 0
    %324 = vmatpush1.bf16.msra.mxu0 0
    %325 = vmatprep.subr.bf16.mxu0 0
    %326 = vmatpush1.bf16.msra.mxu0 0
    %327 = vmatprep.subr.bf16.mxu0 0
    %328 = vmatpush1.bf16.msra.mxu0 0
    %329 = vmatprep.subr.bf16.mxu0 0
    %330 = vmatpush1.bf16.msra.mxu0 0
    %331 = vmatprep.subr.bf16.mxu0 0
    %332 = vmatpush1.bf16.msra.mxu0 0
    %333 = vmatprep.subr.bf16.mxu0 0
    %334 = vmatpush1.bf16.msra.mxu0 0
    %335 = vmatprep.subr.bf16.mxu0 0
    %336 = vmatpush1.bf16.msra.mxu0 0
    %337 = vmatprep.subr.bf16.mxu0 0
    %338 = vmatpush1.bf16.msra.mxu0 0
    %339 = vmatprep.subr.bf16.mxu0 0
    %340 = vmatpush1.bf16.msra.mxu0 0
    %341 = vmatprep.subr.bf16.mxu0 0
    %342 = vmatpush1.bf16.msra.mxu0 0
    %343 = vmatprep.subr.bf16.mxu0 0
    %344 = vmatpush1.bf16.msra.mxu0 0
    %345 = vmatprep.subr.bf16.mxu0 0
    %346 = vmatpush1.bf16.msra.mxu0 0
    %347 = vmatprep.subr.bf16.mxu0 0
    %348 = vmatpush1.bf16.msra.mxu0 0
    %349 = vmatprep.mubr.bf16.mxu0 0
    %350 = vmatmul.mubr.bf16.gmra.mrb[0].mxu0 %v177
    %v351 = vpop.f32.mrb[0].mxu0
    %v352 = vadd.f32 %v290, %v351
    %v353 = vpop.f32.mrb[0].mxu0
    %v354 = vadd.f32 %v294, %v353
    %v355 = vpop.f32.mrb[0].mxu0
    %v356 = vadd.f32 %v290, %v355
    %v357 = vpop.f32.mrb[0].mxu0
    %v358 = vadd.f32 %v294, %v357
    %359 = vdwg.mxu0
    %v364 = vcombine.low %v352, %v354
    %v365 = vcombine.high %v352, %v354
    %v367 = vunpack.c.l.s4 1983009808
    %v368 = vunpack.c.0.s8 %v367
    %v369 = vlaneseq
    %v370 = vshrl.u32 %v369, 7
    %v371 = vsub.s32 %v368, %v370
    %v372 = vrot.slane %v364, %v371
    %v374 = vunpack.c.l.s4 1983009808
    %v375 = vunpack.c.0.s8 %v374
    %v376 = vlaneseq
    %v377 = vshrl.u32 %v376, 7
    %v378 = vsub.s32 %v375, %v377
    %v379 = vrot.slane %v365, %v378
    %v380 = vcombine.high %v372, %v372
    %v381 = vcombine.high %v379, %v379
    %v382 = vcombine.low %v356, %v358
    %v383 = vcombine.high %v356, %v358
    %v385 = vunpack.c.l.s4 1983009808
    %v386 = vunpack.c.0.s8 %v385
    %v387 = vlaneseq
    %v388 = vshrl.u32 %v387, 7
    %v389 = vsub.s32 %v386, %v388
    %v390 = vrot.slane %v382, %v389
    %v392 = vunpack.c.l.s4 1983009808
    %v393 = vunpack.c.0.s8 %v392
    %v394 = vlaneseq
    %v395 = vshrl.u32 %v394, 7
    %v396 = vsub.s32 %v393, %v395
    %v397 = vrot.slane %v383, %v396
    %v398 = vcombine.high %v390, %v390
    %v399 = vcombine.high %v397, %v397
    %408 = vst.msk [vmem:[#allocation3] sm:$0xf] %vm272, %v372
    %409 = vst.msk [vmem:[#allocation3 + $0x4] sm:$0xf] %vm272, %v380
    %410 = vst.msk [vmem:[#allocation3 + $0x8] sm:$0xf] %vm272, %v379
    %411 = vst.msk [vmem:[#allocation3 + $0xc] sm:$0xf] %vm272, %v381
    %412 = vst.msk [vmem:[#allocation3 + $0x10] sm:$0xf] %vm272, %v390
    %413 = vst.msk [vmem:[#allocation3 + $0x14] sm:$0xf] %vm272, %v398
    %414 = vst.msk [vmem:[#allocation3 + $0x18] sm:$0xf] %vm272, %v397
    %415 = vst.msk [vmem:[#allocation3 + $0x1c] sm:$0xf] %vm272, %v399
    %v416 = vld [vmem:[%s2] sm:$0xff]
    %v417 = vld [vmem:[%s2 + $0x8] sm:$0xff]
    %v418 = vld [vmem:[%s2 + $0x10] sm:$0xff]
    %v419 = vld [vmem:[%s2 + $0x18] sm:$0xff]
    %v420 = vld [vmem:[%s2 + $0x20] sm:$0xff]
    %v421 = vld [vmem:[%s2 + $0x28] sm:$0xff]
    %v422 = vld [vmem:[%s2 + $0x30] sm:$0xff]
    %v423 = vld [vmem:[%s2 + $0x38] sm:$0xff]
    %v424 = vld [vmem:[%s6] sm:$0xff]
    %v425 = vld [vmem:[%s6 + $0x8] sm:$0xff]
    %v426 = vld [vmem:[%s6 + $0x10] sm:$0xff]
    %v427 = vld [vmem:[%s6 + $0x18] sm:$0xff]
    %v428 = vld [vmem:[%s6 + $0x20] sm:$0xff]
    %v429 = vld [vmem:[%s6 + $0x28] sm:$0xff]
    %v430 = vld [vmem:[%s6 + $0x30] sm:$0xff]
    %v431 = vld [vmem:[%s6 + $0x38] sm:$0xff]
    %v432 = vld [vmem:[%s4] sm:$0x3]
    %v433 = vld [vmem:[#allocation9] sm:$0x3]
    loop: start=0, step=1, limit=8
    $region70: #{transformer_encoder_layer.3} parent=1 // loop_pre_header
      _
    $region71: #{transformer_encoder_layer.3} parent=1 // loop_header
      %s435 = sphi 0, %s439
      %p436 = scmp.ge.s32.totalorder %s435, 8
      %v440 = vphi 0.0, %v567
      %v441 = vphi 0.0, %v691
    $region72: #{transformer_encoder_layer.3} parent=1 // loop_header_branch
      %438 = sbr.rel (%p436) target = $region76
    $region73: #{transformer_encoder_layer.3} parent=1 // loop_body
      %s442 = ssub.s32 7, %s435
      %s443 = smul.u32 %s435, 2
      %s444 = smul.addr %s443, 2
      %s445 = scalar_lea.vmem [#allocation2], %s444
      %v446 = vld [vmem:[%s445] sm:$0xf]
      %v447 = vpack.c.bf16 %v440, %v440
      %v449 = vlaneseq
      %v450 = vshrl.u32 %v449, 7
      %v451 = vsub.s32 0, %v450
      %v452 = vrot.slane %v432, %v451
      %v453 = vlaneseq
      %v454 = vshrl.u32 %v453, 7
      %v455 = vsub.s32 1, %v454
      %v456 = vrot.slane %v432, %v455
      %460 = vrot.lane.b32.xlu0 %v447, 64
      %v461 = vpop.permute.xlu0 %460
      %v470 = vunpack.c.l.b16 %v416
      %v471 = vunpack.c.h.b16 %v416
      %v472 = vunpack.c.l.b16 %v417
      %v473 = vunpack.c.h.b16 %v417
      %v474 = vunpack.c.l.b16 %v418
      %v475 = vunpack.c.h.b16 %v418
      %v476 = vunpack.c.l.b16 %v419
      %v477 = vunpack.c.h.b16 %v419
      %v478 = vunpack.c.l.b16 %v420
      %v479 = vunpack.c.h.b16 %v420
      %v480 = vunpack.c.l.b16 %v421
      %v481 = vunpack.c.h.b16 %v421
      %v482 = vunpack.c.l.b16 %v422
      %v483 = vunpack.c.h.b16 %v422
      %v484 = vunpack.c.l.b16 %v423
      %v485 = vunpack.c.h.b16 %v423
      %v486 = vpack.c.b16 %v472, %v470
      %v487 = vpack.c.b16 %v473, %v471
      %v488 = vpack.c.b16 %v476, %v474
      %v489 = vpack.c.b16 %v477, %v475
      %v490 = vpack.c.b16 %v480, %v478
      %v491 = vpack.c.b16 %v481, %v479
      %v492 = vpack.c.b16 %v484, %v482
      %v493 = vpack.c.b16 %v485, %v483
      %vm502 = vcmask 523264
      %v504 = vsel %vm502, %v461, 0
      %506 = vmatprep.subr.bf16.mxu0 %v487
      %507 = vmatpush1.bf16.msra.mxu0 %v486
      %508 = vmatprep.subr.bf16.mxu0 %v489
      %509 = vmatpush1.bf16.msra.mxu0 %v488
      %510 = vmatprep.subr.bf16.mxu0 %v491
      %511 = vmatpush1.bf16.msra.mxu0 %v490
      %512 = vmatprep.subr.bf16.mxu0 %v493
      %513 = vmatpush1.bf16.msra.mxu0 %v492
      %514 = vmatprep.subr.bf16.mxu0 0
      %515 = vmatpush1.bf16.msra.mxu0 0
      %516 = vmatprep.subr.bf16.mxu0 0
      %517 = vmatpush1.bf16.msra.mxu0 0
      %518 = vmatprep.subr.bf16.mxu0 0
      %519 = vmatpush1.bf16.msra.mxu0 0
      %520 = vmatprep.subr.bf16.mxu0 0
      %521 = vmatpush1.bf16.msra.mxu0 0
      %522 = vmatprep.subr.bf16.mxu0 0
      %523 = vmatpush1.bf16.msra.mxu0 0
      %524 = vmatprep.subr.bf16.mxu0 0
      %525 = vmatpush1.bf16.msra.mxu0 0
      %526 = vmatprep.subr.bf16.mxu0 0
      %527 = vmatpush1.bf16.msra.mxu0 0
      %528 = vmatprep.subr.bf16.mxu0 0
      %529 = vmatpush1.bf16.msra.mxu0 0
      %530 = vmatprep.subr.bf16.mxu0 0
      %531 = vmatpush1.bf16.msra.mxu0 0
      %532 = vmatprep.subr.bf16.mxu0 0
      %533 = vmatpush1.bf16.msra.mxu0 0
      %534 = vmatprep.subr.bf16.mxu0 0
      %535 = vmatpush1.bf16.msra.mxu0 0
      %536 = vmatprep.subr.bf16.mxu0 0
      %537 = vmatpush1.bf16.msra.mxu0 0
      %538 = vmatprep.mubr.bf16.mxu0 0
      %539 = vmatmul.mubr.bf16.gmra.mrb[0].mxu0 %v504
      %v540 = vpop.f32.mrb[0].mxu0
      %v541 = vadd.f32 %v452, %v540
      %v542 = vpop.f32.mrb[0].mxu0
      %v543 = vadd.f32 %v456, %v542
      %v544 = vpop.f32.mrb[0].mxu0
      %v545 = vpop.f32.mrb[0].mxu0
      %546 = vdwg.mxu0
      %v547 = vadd.f32 %v446, %v541
      %v548 = vxor.u32 %v547, 2147483648
      %v549 = vmul.f32 %v548, 1.442695
      %v550 = vpow.pop %v549
      %v551 = vadd.f32 %v550, 1.0
      %v552 = vrcp.pop %v551
      %v553 = vmul.f32 1.0, %v552
      %v554 = vmul.f32 %v553, %v543
      %v556 = vrot.slane %v446, 2
      %v558 = vadd.f32 %v556, %v554
      %v559 = vtanh.pop %v558
      %v560 = vsub.f32 1.0, %v553
      %562 = vrot.lane.b32.xlu0 %v559, 64
      %v563 = vpop.permute.xlu0 %562
      %v565 = vmul.f32 %v560, %v563
      %v566 = vmul.f32 %v553, %v440
      %v567 = vadd.f32 %v565, %v566
      %s568 = smul.u32 %s442, 2
      %s569 = smul.addr %s568, 2
      %s570 = scalar_lea.vmem [#allocation3], %s569
      %v571 = vld [vmem:[%s570] sm:$0xf]
      %v572 = vpack.c.bf16 %v441, %v441
      %v574 = vlaneseq
      %v575 = vshrl.u32 %v574, 7
      %v576 = vsub.s32 0, %v575
      %v577 = vrot.slane %v433, %v576
      %v578 = vlaneseq
      %v579 = vshrl.u32 %v578, 7
      %v580 = vsub.s32 1, %v579
      %v581 = vrot.slane %v433, %v580
      %585 = vrot.lane.b32.xlu0 %v572, 64
      %v586 = vpop.permute.xlu0 %585
      %v595 = vunpack.c.l.b16 %v424
      %v596 = vunpack.c.h.b16 %v424
      %v597 = vunpack.c.l.b16 %v425
      %v598 = vunpack.c.h.b16 %v425
      %v599 = vunpack.c.l.b16 %v426
      %v600 = vunpack.c.h.b16 %v426
      %v601 = vunpack.c.l.b16 %v427
      %v602 = vunpack.c.h.b16 %v427
      %v603 = vunpack.c.l.b16 %v428
      %v604 = vunpack.c.h.b16 %v428
      %v605 = vunpack.c.l.b16 %v429
      %v606 = vunpack.c.h.b16 %v429
      %v607 = vunpack.c.l.b16 %v430
      %v608 = vunpack.c.h.b16 %v430
      %v609 = vunpack.c.l.b16 %v431
      %v610 = vunpack.c.h.b16 %v431
      %v611 = vpack.c.b16 %v597, %v595
      %v612 = vpack.c.b16 %v598, %v596
      %v613 = vpack.c.b16 %v601, %v599
      %v614 = vpack.c.b16 %v602, %v600
      %v615 = vpack.c.b16 %v605, %v603
      %v616 = vpack.c.b16 %v606, %v604
      %v617 = vpack.c.b16 %v609, %v607
      %v618 = vpack.c.b16 %v610, %v608
      %v628 = vsel %vm502, %v586, 0
      %630 = vmatprep.subr.bf16.mxu0 %v612
      %631 = vmatpush1.bf16.msra.mxu0 %v611
      %632 = vmatprep.subr.bf16.mxu0 %v614
      %633 = vmatpush1.bf16.msra.mxu0 %v613
      %634 = vmatprep.subr.bf16.mxu0 %v616
      %635 = vmatpush1.bf16.msra.mxu0 %v615
      %636 = vmatprep.subr.bf16.mxu0 %v618
      %637 = vmatpush1.bf16.msra.mxu0 %v617
      %638 = vmatprep.subr.bf16.mxu0 0
      %639 = vmatpush1.bf16.msra.mxu0 0
      %640 = vmatprep.subr.bf16.mxu0 0
      %641 = vmatpush1.bf16.msra.mxu0 0
      %642 = vmatprep.subr.bf16.mxu0 0
      %643 = vmatpush1.bf16.msra.mxu0 0
      %644 = vmatprep.subr.bf16.mxu0 0
      %645 = vmatpush1.bf16.msra.mxu0 0
      %646 = vmatprep.subr.bf16.mxu0 0
      %647 = vmatpush1.bf16.msra.mxu0 0
      %648 = vmatprep.subr.bf16.mxu0 0
      %649 = vmatpush1.bf16.msra.mxu0 0
      %650 = vmatprep.subr.bf16.mxu0 0
      %651 = vmatpush1.bf16.msra.mxu0 0
      %652 = vmatprep.subr.bf16.mxu0 0
      %653 = vmatpush1.bf16.msra.mxu0 0
      %654 = vmatprep.subr.bf16.mxu0 0
      %655 = vmatpush1.bf16.msra.mxu0 0
      %656 = vmatprep.subr.bf16.mxu0 0
      %657 = vmatpush1.bf16.msra.mxu0 0
      %658 = vmatprep.subr.bf16.mxu0 0
      %659 = vmatpush1.bf16.msra.mxu0 0
      %660 = vmatprep.subr.bf16.mxu0 0
      %661 = vmatpush1.bf16.msra.mxu0 0
      %662 = vmatprep.mubr.bf16.mxu0 0
      %663 = vmatmul.mubr.bf16.gmra.mrb[0].mxu0 %v628
      %v664 = vpop.f32.mrb[0].mxu0
      %v665 = vadd.f32 %v577, %v664
      %v666 = vpop.f32.mrb[0].mxu0
      %v667 = vadd.f32 %v581, %v666
      %v668 = vpop.f32.mrb[0].mxu0
      %v669 = vpop.f32.mrb[0].mxu0
      %670 = vdwg.mxu0
      %v671 = vadd.f32 %v571, %v665
      %v672 = vxor.u32 %v671, 2147483648
      %v673 = vmul.f32 %v672, 1.442695
      %v674 = vpow.pop %v673
      %v675 = vadd.f32 %v674, 1.0
      %v676 = vrcp.pop %v675
      %v677 = vmul.f32 1.0, %v676
      %v678 = vmul.f32 %v677, %v667
      %v680 = vrot.slane %v571, 2
      %v682 = vadd.f32 %v680, %v678
      %v683 = vtanh.pop %v682
      %v684 = vsub.f32 1.0, %v677
      %686 = vrot.lane.b32.xlu0 %v683, 64
      %v687 = vpop.permute.xlu0 %686
      %v689 = vmul.f32 %v684, %v687
      %v690 = vmul.f32 %v677, %v441
      %v691 = vadd.f32 %v689, %v690
      %v694 = vunpack.c.l.s4 1983009808
      %v695 = vunpack.c.0.s8 %v694
      %v696 = vlaneseq
      %v697 = vshrl.u32 %v696, 7
      %v698 = vsub.s32 %v695, %v697
      %v699 = vrot.slane %v567, %v698
      %700 = vrot.lane.b32.xlu0 %v699, 64
      %v701 = vpop.permute.xlu0 %700
      %s703 = scalar_lea.vmem [#allocation4], %s443
      %vm704 = vcmask 517120
      %705 = vst.msk [vmem:[%s703] sm:$0x3] %vm704, %v701
      %v708 = vunpack.c.l.s4 1983009808
      %v709 = vunpack.c.0.s8 %v708
      %v710 = vlaneseq
      %v711 = vshrl.u32 %v710, 7
      %v712 = vsub.s32 %v709, %v711
      %v713 = vrot.slane %v691, %v712
      %714 = vrot.lane.b32.xlu0 %v713, 64
      %v715 = vpop.permute.xlu0 %714
      %s717 = scalar_lea.vmem [#allocation5], %s568
      %718 = vst.msk [vmem:[%s717] sm:$0x3] %vm704, %v715
    $region74: #{transformer_encoder_layer.3} parent=1 // loop_footer
      %s439 = sadd.s32 1, %s435
    $region75: #{transformer_encoder_layer.3} parent=1 // loop_footer_branch
      %434 = sbr.rel target = $region71
    $region76: #{transformer_encoder_layer.3} parent=1 // loop_exit
      _
    %v719 = vld [vmem:[#allocation4] sm:$0x3]
    %v720 = vld [vmem:[#allocation4 + $0x2] sm:$0x3]
    %v721 = vld [vmem:[#allocation4 + $0x4] sm:$0x3]
    %v722 = vld [vmem:[#allocation4 + $0x6] sm:$0x3]
    %v723 = vld [vmem:[#allocation4 + $0x8] sm:$0x3]
    %v724 = vld [vmem:[#allocation4 + $0xa] sm:$0x3]
    %v725 = vld [vmem:[#allocation4 + $0xc] sm:$0x3]
    %v726 = vld [vmem:[#allocation4 + $0xe] sm:$0x3]
    %v727 = vmax.f32 %v719, 0.0
    %v728 = vmax.f32 %v720, 0.0
    %v729 = vmax.f32 %v721, 0.0
    %v730 = vmax.f32 %v722, 0.0
    %v731 = vmax.f32 %v723, 0.0
    %v732 = vmax.f32 %v724, 0.0
    %v733 = vmax.f32 %v725, 0.0
    %v734 = vmax.f32 %v726, 0.0
    %v743 = vcombine.low %v727, %v728
    %v744 = vcombine.low %v729, %v730
    %v746 = vunpack.c.l.s4 1983009808
    %v747 = vunpack.c.0.s8 %v746
    %v748 = vlaneseq
    %v749 = vshrl.u32 %v748, 7
    %v750 = vsub.s32 %v747, %v749
    %v751 = vrot.slane %v743, %v750
    %v753 = vunpack.c.l.s4 1983009808
    %v754 = vunpack.c.0.s8 %v753
    %v755 = vlaneseq
    %v756 = vshrl.u32 %v755, 7
    %v757 = vsub.s32 %v754, %v756
    %v758 = vrot.slane %v744, %v757
    %v759 = vcombine.low %v751, %v758
    %v760 = vcombine.low %v731, %v732
    %v761 = vcombine.low %v733, %v734
    %v763 = vunpack.c.l.s4 1983009808
    %v764 = vunpack.c.0.s8 %v763
    %v765 = vlaneseq
    %v766 = vshrl.u32 %v765, 7
    %v767 = vsub.s32 %v764, %v766
    %v768 = vrot.slane %v760, %v767
    %v770 = vunpack.c.l.s4 1983009808
    %v771 = vunpack.c.0.s8 %v770
    %v772 = vlaneseq
    %v773 = vshrl.u32 %v772, 7
    %v774 = vsub.s32 %v771, %v773
    %v775 = vrot.slane %v761, %v774
    %v776 = vcombine.low %v768, %v775
    %v779 = vpack.c.bf16 %v776, %v759
    %v780 = vld [vmem:[#allocation5] sm:$0x3]
    %v781 = vld [vmem:[#allocation5 + $0x2] sm:$0x3]
    %v782 = vld [vmem:[#allocation5 + $0x4] sm:$0x3]
    %v783 = vld [vmem:[#allocation5 + $0x6] sm:$0x3]
    %v784 = vld [vmem:[#allocation5 + $0x8] sm:$0x3]
    %v785 = vld [vmem:[#allocation5 + $0xa] sm:$0x3]
    %v786 = vld [vmem:[#allocation5 + $0xc] sm:$0x3]
    %v787 = vld [vmem:[#allocation5 + $0xe] sm:$0x3]
    %v788 = vmax.f32 %v780, 0.0
    %v789 = vmax.f32 %v781, 0.0
    %v790 = vmax.f32 %v782, 0.0
    %v791 = vmax.f32 %v783, 0.0
    %v792 = vmax.f32 %v784, 0.0
    %v793 = vmax.f32 %v785, 0.0
    %v794 = vmax.f32 %v786, 0.0
    %v795 = vmax.f32 %v787, 0.0
    %v804 = vcombine.low %v788, %v789
    %v805 = vcombine.low %v790, %v791
    %v807 = vunpack.c.l.s4 1983009808
    %v808 = vunpack.c.0.s8 %v807
    %v809 = vlaneseq
    %v810 = vshrl.u32 %v809, 7
    %v811 = vsub.s32 %v808, %v810
    %v812 = vrot.slane %v804, %v811
    %v814 = vunpack.c.l.s4 1983009808
    %v815 = vunpack.c.0.s8 %v814
    %v816 = vlaneseq
    %v817 = vshrl.u32 %v816, 7
    %v818 = vsub.s32 %v815, %v817
    %v819 = vrot.slane %v805, %v818
    %v820 = vcombine.low %v812, %v819
    %v821 = vcombine.low %v792, %v793
    %v822 = vcombine.low %v794, %v795
    %v824 = vunpack.c.l.s4 1983009808
    %v825 = vunpack.c.0.s8 %v824
    %v826 = vlaneseq
    %v827 = vshrl.u32 %v826, 7
    %v828 = vsub.s32 %v825, %v827
    %v829 = vrot.slane %v821, %v828
    %v831 = vunpack.c.l.s4 1983009808
    %v832 = vunpack.c.0.s8 %v831
    %v833 = vlaneseq
    %v834 = vshrl.u32 %v833, 7
    %v835 = vsub.s32 %v832, %v834
    %v836 = vrot.slane %v822, %v835
    %v837 = vcombine.low %v829, %v836
    %v840 = vpack.c.bf16 %v837, %v820
    %v841 = vld [vmem:[%s9] sm:$0xf]
    %v842 = vld [vmem:[%s9 + $0x4] sm:$0xf]
    %v843 = vld [vmem:[%s9 + $0x8] sm:$0xf]
    %v844 = vld [vmem:[%s9 + $0xc] sm:$0xf]
    %v845 = vld [vmem:[%s9 + $0x10] sm:$0xf]
    %v846 = vld [vmem:[%s9 + $0x14] sm:$0xf]
    %v847 = vld [vmem:[%s9 + $0x18] sm:$0xf]
    %v848 = vld [vmem:[%s9 + $0x1c] sm:$0xf]
    %v849 = vld [vmem:[%s10] sm:$0xf]
    %v850 = vld [vmem:[%s10 + $0x4] sm:$0xf]
    %v851 = vld [vmem:[%s10 + $0x8] sm:$0xf]
    %v852 = vld [vmem:[%s10 + $0xc] sm:$0xf]
    %v853 = vld [vmem:[%s10 + $0x10] sm:$0xf]
    %v854 = vld [vmem:[%s10 + $0x14] sm:$0xf]
    %v855 = vld [vmem:[%s10 + $0x18] sm:$0xf]
    %v856 = vld [vmem:[%s10 + $0x1c] sm:$0xf]
    %v865 = vunpack.c.l.b16 %v849
    %v866 = vunpack.c.l.b16 %v850
    %v867 = vunpack.c.l.b16 %v851
    %v868 = vunpack.c.l.b16 %v852
    %v869 = vunpack.c.l.b16 %v853
    %v870 = vunpack.c.l.b16 %v854
    %v871 = vunpack.c.l.b16 %v855
    %v872 = vunpack.c.l.b16 %v856
    %v873 = vpack.c.b16 %v866, %v865
    %v874 = vpack.c.b16 %v868, %v867
    %v875 = vpack.c.b16 %v870, %v869
    %v876 = vpack.c.b16 %v872, %v871
    %vm881 = vcmask 523264
    %v883 = vsel %vm881, %v840, 0
    %885 = vmatprep.subr.bf16.mxu0 0
    %886 = vmatpush1.bf16.msra.mxu0 %v873
    %887 = vmatprep.subr.bf16.mxu0 0
    %888 = vmatpush1.bf16.msra.mxu0 %v874
    %889 = vmatprep.subr.bf16.mxu0 0
    %890 = vmatpush1.bf16.msra.mxu0 %v875
    %891 = vmatprep.subr.bf16.mxu0 0
    %892 = vmatpush1.bf16.msra.mxu0 %v876
    %893 = vmatprep.subr.bf16.mxu0 0
    %894 = vmatpush1.bf16.msra.mxu0 0
    %895 = vmatprep.subr.bf16.mxu0 0
    %896 = vmatpush1.bf16.msra.mxu0 0
    %897 = vmatprep.subr.bf16.mxu0 0
    %898 = vmatpush1.bf16.msra.mxu0 0
    %899 = vmatprep.subr.bf16.mxu0 0
    %900 = vmatpush1.bf16.msra.mxu0 0
    %901 = vmatprep.subr.bf16.mxu0 0
    %902 = vmatpush1.bf16.msra.mxu0 0
    %903 = vmatprep.subr.bf16.mxu0 0
    %904 = vmatpush1.bf16.msra.mxu0 0
    %905 = vmatprep.subr.bf16.mxu0 0
    %906 = vmatpush1.bf16.msra.mxu0 0
    %907 = vmatprep.subr.bf16.mxu0 0
    %908 = vmatpush1.bf16.msra.mxu0 0
    %909 = vmatprep.subr.bf16.mxu0 0
    %910 = vmatpush1.bf16.msra.mxu0 0
    %911 = vmatprep.subr.bf16.mxu0 0
    %912 = vmatpush1.bf16.msra.mxu0 0
    %913 = vmatprep.subr.bf16.mxu0 0
    %914 = vmatpush1.bf16.msra.mxu0 0
    %915 = vmatprep.subr.bf16.mxu0 0
    %916 = vmatpush1.bf16.msra.mxu0 0
    %917 = vmatprep.mubr.bf16.mxu0 0
    %918 = vmatmul.mubr.bf16.gmra.mrb[0].mxu0 %v883
    %v919 = vpop.f32.mrb[0].mxu0
    %v920 = vadd.f32 0.0, %v919
    %v921 = vpop.f32.mrb[0].mxu0
    %v922 = vpop.f32.mrb[0].mxu0
    %v923 = vadd.f32 0.0, %v922
    %v924 = vpop.f32.mrb[0].mxu0
    %925 = vdwg.mxu0
    %v934 = vunpack.c.l.b16 %v841
    %v935 = vunpack.c.l.b16 %v842
    %v936 = vunpack.c.l.b16 %v843
    %v937 = vunpack.c.l.b16 %v844
    %v938 = vunpack.c.l.b16 %v845
    %v939 = vunpack.c.l.b16 %v846
    %v940 = vunpack.c.l.b16 %v847
    %v941 = vunpack.c.l.b16 %v848
    %v942 = vpack.c.b16 %v935, %v934
    %v943 = vpack.c.b16 %v937, %v936
    %v944 = vpack.c.b16 %v939, %v938
    %v945 = vpack.c.b16 %v941, %v940
    %v951 = vsel %vm881, %v779, 0
    %953 = vmatprep.subr.bf16.mxu0 0
    %954 = vmatpush1.bf16.msra.mxu0 %v942
    %955 = vmatprep.subr.bf16.mxu0 0
    %956 = vmatpush1.bf16.msra.mxu0 %v943
    %957 = vmatprep.subr.bf16.mxu0 0
    %958 = vmatpush1.bf16.msra.mxu0 %v944
    %959 = vmatprep.subr.bf16.mxu0 0
    %960 = vmatpush1.bf16.msra.mxu0 %v945
    %961 = vmatprep.subr.bf16.mxu0 0
    %962 = vmatpush1.bf16.msra.mxu0 0
    %963 = vmatprep.subr.bf16.mxu0 0
    %964 = vmatpush1.bf16.msra.mxu0 0
    %965 = vmatprep.subr.bf16.mxu0 0
    %966 = vmatpush1.bf16.msra.mxu0 0
    %967 = vmatprep.subr.bf16.mxu0 0
    %968 = vmatpush1.bf16.msra.mxu0 0
    %969 = vmatprep.subr.bf16.mxu0 0
    %970 = vmatpush1.bf16.msra.mxu0 0
    %971 = vmatprep.subr.bf16.mxu0 0
    %972 = vmatpush1.bf16.msra.mxu0 0
    %973 = vmatprep.subr.bf16.mxu0 0
    %974 = vmatpush1.bf16.msra.mxu0 0
    %975 = vmatprep.subr.bf16.mxu0 0
    %976 = vmatpush1.bf16.msra.mxu0 0
    %977 = vmatprep.subr.bf16.mxu0 0
    %978 = vmatpush1.bf16.msra.mxu0 0
    %979 = vmatprep.subr.bf16.mxu0 0
    %980 = vmatpush1.bf16.msra.mxu0 0
    %981 = vmatprep.subr.bf16.mxu0 0
    %982 = vmatpush1.bf16.msra.mxu0 0
    %983 = vmatprep.subr.bf16.mxu0 0
    %984 = vmatpush1.bf16.msra.mxu0 0
    %985 = vmatprep.mubr.bf16.mxu0 0
    %986 = vmatmul.mubr.bf16.gmra.mrb[0].mxu0 %v951
    %v987 = vpop.f32.mrb[0].mxu0
    %v988 = vadd.f32 %v920, %v987
    %v989 = vpop.f32.mrb[0].mxu0
    %v990 = vpop.f32.mrb[0].mxu0
    %v991 = vadd.f32 %v923, %v990
    %v992 = vpop.f32.mrb[0].mxu0
    %993 = vdwg.mxu0
    %v994 = vld [vmem:[#allocation11] sm:$0x1]
    %v996 = vlaneseq
    %v997 = vshrl.u32 %v996, 7
    %v998 = vsub.s32 0, %v997
    %v999 = vrot.slane %v994, %v998
    %v1001 = vadd.f32 %v988, %v999
    %v1002 = vadd.f32 %v991, %v999
    %v1005 = vcombine.high %v1001, %v1001
    %v1007 = vunpack.c.l.s4 1983009808
    %v1008 = vunpack.c.0.s8 %v1007
    %v1009 = vlaneseq
    %v1010 = vshrl.u32 %v1009, 7
    %v1011 = vsub.s32 %v1008, %v1010
    %v1012 = vrot.slane %v1001, %v1011
    %v1014 = vunpack.c.l.s4 1983009808
    %v1015 = vunpack.c.0.s8 %v1014
    %v1016 = vlaneseq
    %v1017 = vshrl.u32 %v1016, 7
    %v1018 = vsub.s32 %v1015, %v1017
    %v1019 = vrot.slane %v1005, %v1018
    %v1020 = vcombine.high %v1012, %v1012
    %v1021 = vcombine.high %v1019, %v1019
    %v1022 = vcombine.high %v1002, %v1002
    %v1024 = vunpack.c.l.s4 1983009808
    %v1025 = vunpack.c.0.s8 %v1024
    %v1026 = vlaneseq
    %v1027 = vshrl.u32 %v1026, 7
    %v1028 = vsub.s32 %v1025, %v1027
    %v1029 = vrot.slane %v1002, %v1028
    %v1031 = vunpack.c.l.s4 1983009808
    %v1032 = vunpack.c.0.s8 %v1031
    %v1033 = vlaneseq
    %v1034 = vshrl.u32 %v1033, 7
    %v1035 = vsub.s32 %v1032, %v1034
    %v1036 = vrot.slane %v1022, %v1035
    %v1037 = vcombine.high %v1029, %v1029
    %v1038 = vcombine.high %v1036, %v1036
    %v1047 = vadd.f32 %v86, %v1012
    %v1048 = vadd.f32 %v87, %v1020
    %v1049 = vadd.f32 %v88, %v1019
    %v1050 = vadd.f32 %v89, %v1021
    %v1051 = vadd.f32 %v90, %v1029
    %v1052 = vadd.f32 %v91, %v1037
    %v1053 = vadd.f32 %v92, %v1036
    %v1054 = vadd.f32 %v93, %v1038
    %v1055 = vld [vmem:[%s12] sm:$0x1]
    %v1056 = vld [vmem:[%s13] sm:$0x1]
    %v1065 = vcombine.low %v1047, %v1048
    %v1066 = vcombine.low %v1049, %v1050
    %v1068 = vunpack.c.l.s4 1983009808
    %v1069 = vunpack.c.0.s8 %v1068
    %v1070 = vlaneseq
    %v1071 = vshrl.u32 %v1070, 7
    %v1072 = vsub.s32 %v1069, %v1071
    %v1073 = vrot.slane %v1065, %v1072
    %v1075 = vunpack.c.l.s4 1983009808
    %v1076 = vunpack.c.0.s8 %v1075
    %v1077 = vlaneseq
    %v1078 = vshrl.u32 %v1077, 7
    %v1079 = vsub.s32 %v1076, %v1078
    %v1080 = vrot.slane %v1066, %v1079
    %v1081 = vcombine.low %v1073, %v1080
    %v1082 = vcombine.low %v1051, %v1052
    %v1083 = vcombine.low %v1053, %v1054
    %v1085 = vunpack.c.l.s4 1983009808
    %v1086 = vunpack.c.0.s8 %v1085
    %v1087 = vlaneseq
    %v1088 = vshrl.u32 %v1087, 7
    %v1089 = vsub.s32 %v1086, %v1088
    %v1090 = vrot.slane %v1082, %v1089
    %v1092 = vunpack.c.l.s4 1983009808
    %v1093 = vunpack.c.0.s8 %v1092
    %v1094 = vlaneseq
    %v1095 = vshrl.u32 %v1094, 7
    %v1096 = vsub.s32 %v1093, %v1095
    %v1097 = vrot.slane %v1083, %v1096
    %v1098 = vcombine.low %v1090, %v1097
    %v1101 = vsel %vm175, %v1081, 0.0
    %1102 = vadd.xlane.f32.xlu0 %v1101
    %v1103 = vpop.xlane.xlu0 %1102
    %v1104 = vsel %vm175, %v1098, 0.0
    %1105 = vadd.xlane.f32.xlu0 %v1104
    %v1106 = vpop.xlane.xlu0 %1105
    %v1107 = vrcp.pop 32.0
    %v1108 = vmul.f32 %v1103, %v1107
    %v1109 = vmul.f32 %v1106, %v1107
    %v1113 = vunpack.c.l.s4 269488144
    %v1114 = vunpack.c.0.s8 %v1113
    %v1115 = vlaneseq
    %v1116 = vshrl.u32 %v1115, 7
    %v1117 = vsub.s32 %v1114, %v1116
    %v1118 = vrot.slane %v1108, %v1117
    %v1120 = vunpack.c.l.s4 842150450
    %v1121 = vunpack.c.0.s8 %v1120
    %v1122 = vlaneseq
    %v1123 = vshrl.u32 %v1122, 7
    %v1124 = vsub.s32 %v1121, %v1123
    %v1125 = vrot.slane %v1108, %v1124
    %v1127 = vunpack.c.l.s4 1414812756
    %v1128 = vunpack.c.0.s8 %v1127
    %v1129 = vlaneseq
    %v1130 = vshrl.u32 %v1129, 7
    %v1131 = vsub.s32 %v1128, %v1130
    %v1132 = vrot.slane %v1108, %v1131
    %v1134 = vunpack.c.l.s4 1987475062
    %v1135 = vunpack.c.0.s8 %v1134
    %v1136 = vlaneseq
    %v1137 = vshrl.u32 %v1136, 7
    %v1138 = vsub.s32 %v1135, %v1137
    %v1139 = vrot.slane %v1108, %v1138
    %v1141 = vunpack.c.l.s4 269488144
    %v1142 = vunpack.c.0.s8 %v1141
    %v1143 = vlaneseq
    %v1144 = vshrl.u32 %v1143, 7
    %v1145 = vsub.s32 %v1142, %v1144
    %v1146 = vrot.slane %v1109, %v1145
    %v1148 = vunpack.c.l.s4 842150450
    %v1149 = vunpack.c.0.s8 %v1148
    %v1150 = vlaneseq
    %v1151 = vshrl.u32 %v1150, 7
    %v1152 = vsub.s32 %v1149, %v1151
    %v1153 = vrot.slane %v1109, %v1152
    %v1155 = vunpack.c.l.s4 1414812756
    %v1156 = vunpack.c.0.s8 %v1155
    %v1157 = vlaneseq
    %v1158 = vshrl.u32 %v1157, 7
    %v1159 = vsub.s32 %v1156, %v1158
    %v1160 = vrot.slane %v1109, %v1159
    %v1162 = vunpack.c.l.s4 1987475062
    %v1163 = vunpack.c.0.s8 %v1162
    %v1164 = vlaneseq
    %v1165 = vshrl.u32 %v1164, 7
    %v1166 = vsub.s32 %v1163, %v1165
    %v1167 = vrot.slane %v1109, %v1166
    %v1176 = vsub.f32 %v1047, %v1118
    %v1177 = vsub.f32 %v1048, %v1125
    %v1178 = vsub.f32 %v1049, %v1132
    %v1179 = vsub.f32 %v1050, %v1139
    %v1180 = vsub.f32 %v1051, %v1146
    %v1181 = vsub.f32 %v1052, %v1153
    %v1182 = vsub.f32 %v1053, %v1160
    %v1183 = vsub.f32 %v1054, %v1167
    %v1184 = vmul.f32 %v1176, %v1176
    %v1185 = vmul.f32 %v1177, %v1177
    %v1186 = vmul.f32 %v1178, %v1178
    %v1187 = vmul.f32 %v1179, %v1179
    %v1188 = vmul.f32 %v1180, %v1180
    %v1189 = vmul.f32 %v1181, %v1181
    %v1190 = vmul.f32 %v1182, %v1182
    %v1191 = vmul.f32 %v1183, %v1183
    %v1200 = vcombine.low %v1184, %v1185
    %v1201 = vcombine.low %v1186, %v1187
    %v1203 = vunpack.c.l.s4 1983009808
    %v1204 = vunpack.c.0.s8 %v1203
    %v1205 = vlaneseq
    %v1206 = vshrl.u32 %v1205, 7
    %v1207 = vsub.s32 %v1204, %v1206
    %v1208 = vrot.slane %v1200, %v1207
    %v1210 = vunpack.c.l.s4 1983009808
    %v1211 = vunpack.c.0.s8 %v1210
    %v1212 = vlaneseq
    %v1213 = vshrl.u32 %v1212, 7
    %v1214 = vsub.s32 %v1211, %v1213
    %v1215 = vrot.slane %v1201, %v1214
    %v1216 = vcombine.low %v1208, %v1215
    %v1217 = vcombine.low %v1188, %v1189
    %v1218 = vcombine.low %v1190, %v1191
    %v1220 = vunpack.c.l.s4 1983009808
    %v1221 = vunpack.c.0.s8 %v1220
    %v1222 = vlaneseq
    %v1223 = vshrl.u32 %v1222, 7
    %v1224 = vsub.s32 %v1221, %v1223
    %v1225 = vrot.slane %v1217, %v1224
    %v1227 = vunpack.c.l.s4 1983009808
    %v1228 = vunpack.c.0.s8 %v1227
    %v1229 = vlaneseq
    %v1230 = vshrl.u32 %v1229, 7
    %v1231 = vsub.s32 %v1228, %v1230
    %v1232 = vrot.slane %v1218, %v1231
    %v1233 = vcombine.low %v1225, %v1232
    %v1236 = vsel %vm175, %v1216, 0.0
    %1237 = vadd.xlane.f32.xlu0 %v1236
    %v1238 = vpop.xlane.xlu0 %1237
    %v1239 = vsel %vm175, %v1233, 0.0
    %1240 = vadd.xlane.f32.xlu0 %v1239
    %v1241 = vpop.xlane.xlu0 %1240
    %v1242 = vmul.f32 %v1238, %v1107
    %v1243 = vmul.f32 %v1241, %v1107
    %v1244 = vadd.f32 %v1242, 1e-05
    %v1245 = vadd.f32 %v1243, 1e-05
    %v1246 = vrsqrt.pop %v1244
    %v1247 = vrsqrt.pop %v1245
    %v1251 = vunpack.c.l.s4 269488144
    %v1252 = vunpack.c.0.s8 %v1251
    %v1253 = vlaneseq
    %v1254 = vshrl.u32 %v1253, 7
    %v1255 = vsub.s32 %v1252, %v1254
    %v1256 = vrot.slane %v1246, %v1255
    %v1258 = vunpack.c.l.s4 842150450
    %v1259 = vunpack.c.0.s8 %v1258
    %v1260 = vlaneseq
    %v1261 = vshrl.u32 %v1260, 7
    %v1262 = vsub.s32 %v1259, %v1261
    %v1263 = vrot.slane %v1246, %v1262
    %v1265 = vunpack.c.l.s4 1414812756
    %v1266 = vunpack.c.0.s8 %v1265
    %v1267 = vlaneseq
    %v1268 = vshrl.u32 %v1267, 7
    %v1269 = vsub.s32 %v1266, %v1268
    %v1270 = vrot.slane %v1246, %v1269
    %v1272 = vunpack.c.l.s4 1987475062
    %v1273 = vunpack.c.0.s8 %v1272
    %v1274 = vlaneseq
    %v1275 = vshrl.u32 %v1274, 7
    %v1276 = vsub.s32 %v1273, %v1275
    %v1277 = vrot.slane %v1246, %v1276
    %v1279 = vunpack.c.l.s4 269488144
    %v1280 = vunpack.c.0.s8 %v1279
    %v1281 = vlaneseq
    %v1282 = vshrl.u32 %v1281, 7
    %v1283 = vsub.s32 %v1280, %v1282
    %v1284 = vrot.slane %v1247, %v1283
    %v1286 = vunpack.c.l.s4 842150450
    %v1287 = vunpack.c.0.s8 %v1286
    %v1288 = vlaneseq
    %v1289 = vshrl.u32 %v1288, 7
    %v1290 = vsub.s32 %v1287, %v1289
    %v1291 = vrot.slane %v1247, %v1290
    %v1293 = vunpack.c.l.s4 1414812756
    %v1294 = vunpack.c.0.s8 %v1293
    %v1295 = vlaneseq
    %v1296 = vshrl.u32 %v1295, 7
    %v1297 = vsub.s32 %v1294, %v1296
    %v1298 = vrot.slane %v1247, %v1297
    %v1300 = vunpack.c.l.s4 1987475062
    %v1301 = vunpack.c.0.s8 %v1300
    %v1302 = vlaneseq
    %v1303 = vshrl.u32 %v1302, 7
    %v1304 = vsub.s32 %v1301, %v1303
    %v1305 = vrot.slane %v1247, %v1304
    %v1314 = vmul.f32 %v1176, %v1256
    %v1315 = vmul.f32 %v1177, %v1263
    %v1316 = vmul.f32 %v1178, %v1270
    %v1317 = vmul.f32 %v1179, %v1277
    %v1318 = vmul.f32 %v1180, %v1284
    %v1319 = vmul.f32 %v1181, %v1291
    %v1320 = vmul.f32 %v1182, %v1298
    %v1321 = vmul.f32 %v1183, %v1305
    %v1323 = vlaneseq
    %v1324 = vshrl.u32 %v1323, 7
    %v1325 = vsub.s32 0, %v1324
    %v1326 = vrot.slane %v1055, %v1325
    %v1327 = vcombine.high %v1326, %v1326
    %v1329 = vunpack.c.l.s4 1983009808
    %v1330 = vunpack.c.0.s8 %v1329
    %v1331 = vlaneseq
    %v1332 = vshrl.u32 %v1331, 7
    %v1333 = vsub.s32 %v1330, %v1332
    %v1334 = vrot.slane %v1326, %v1333
    %v1336 = vunpack.c.l.s4 1983009808
    %v1337 = vunpack.c.0.s8 %v1336
    %v1338 = vlaneseq
    %v1339 = vshrl.u32 %v1338, 7
    %v1340 = vsub.s32 %v1337, %v1339
    %v1341 = vrot.slane %v1327, %v1340
    %v1342 = vcombine.high %v1334, %v1334
    %v1343 = vcombine.high %v1341, %v1341
    %v1348 = vmul.f32 %v1314, %v1334
    %v1349 = vmul.f32 %v1315, %v1342
    %v1350 = vmul.f32 %v1316, %v1341
    %v1351 = vmul.f32 %v1317, %v1343
    %v1352 = vmul.f32 %v1318, %v1334
    %v1353 = vmul.f32 %v1319, %v1342
    %v1354 = vmul.f32 %v1320, %v1341
    %v1355 = vmul.f32 %v1321, %v1343
    %v1357 = vlaneseq
    %v1358 = vshrl.u32 %v1357, 7
    %v1359 = vsub.s32 0, %v1358
    %v1360 = vrot.slane %v1056, %v1359
    %v1361 = vcombine.high %v1360, %v1360
    %v1363 = vunpack.c.l.s4 1983009808
    %v1364 = vunpack.c.0.s8 %v1363
    %v1365 = vlaneseq
    %v1366 = vshrl.u32 %v1365, 7
    %v1367 = vsub.s32 %v1364, %v1366
    %v1368 = vrot.slane %v1360, %v1367
    %v1370 = vunpack.c.l.s4 1983009808
    %v1371 = vunpack.c.0.s8 %v1370
    %v1372 = vlaneseq
    %v1373 = vshrl.u32 %v1372, 7
    %v1374 = vsub.s32 %v1371, %v1373
    %v1375 = vrot.slane %v1361, %v1374
    %v1376 = vcombine.high %v1368, %v1368
    %v1377 = vcombine.high %v1375, %v1375
    %v1382 = vadd.f32 %v1348, %v1368
    %v1383 = vadd.f32 %v1349, %v1376
    %v1384 = vadd.f32 %v1350, %v1375
    %v1385 = vadd.f32 %v1351, %v1377
    %v1386 = vadd.f32 %v1352, %v1368
    %v1387 = vadd.f32 %v1353, %v1376
    %v1388 = vadd.f32 %v1354, %v1375
    %v1389 = vadd.f32 %v1355, %v1377
    %vm1390 = vcmask 254976
    %1391 = vst.msk [vmem:[#allocation12] sm:$0x3] %vm1390, %v1382
    %1392 = vst.msk [vmem:[#allocation12 + $0x2] sm:$0x3] %vm1390, %v1383
    %1393 = vst.msk [vmem:[#allocation12 + $0x4] sm:$0x3] %vm1390, %v1384
    %1394 = vst.msk [vmem:[#allocation12 + $0x6] sm:$0x3] %vm1390, %v1385
    %1395 = vst.msk [vmem:[#allocation12 + $0x8] sm:$0x3] %vm1390, %v1386
    %1396 = vst.msk [vmem:[#allocation12 + $0xa] sm:$0x3] %vm1390, %v1387
    %1397 = vst.msk [vmem:[#allocation12 + $0xc] sm:$0x3] %vm1390, %v1388
    %1398 = vst.msk [vmem:[#allocation12 + $0xe] sm:$0x3] %vm1390, %v1389
    // Predicated region
    $region77: #{transformer_encoder_layer.3} parent=1 // pred_check
      _
    $region78: #{transformer_encoder_layer.3} parent=1 // pred_check_branch
      %1400 = sbr.rel (0) target = $region80
    $region79: #{transformer_encoder_layer.3} parent=1 // pred_region
      %s1402 = ssub.s32 256, 256
      %1403 = vsyncadd [#allocation8], %s1402
      %s1404 = sshll.u32 [#allocation12], 4
      %s1405 = int_to_ptr.vmem [resolvable:$true] %s1404
      %1410 = dma.vmem_to_hbm [thread:$0]  %s1405, 256, %s14, [#allocation8], 32, 32, 2
    $region80: #{transformer_encoder_layer.3} parent=1 // pred_fallthru
      _
    // Predicated region
    $region81: #{transformer_encoder_layer.3} parent=1 // pred_check
      _
    $region82: #{transformer_encoder_layer.3} parent=1 // pred_check_branch
      %1412 = sbr.rel (0) target = $region84
    $region83: #{transformer_encoder_layer.3} parent=1 // pred_region
      %1413 = dma.done [#allocation8], 256
    $region84: #{transformer_encoder_layer.3} parent=1 // pred_fallthru
      _
    %1414 = vsyncpa [#allocation7], 1
    %1415 = vsyncpa [#allocation10], 1
    %1416 = vsyncpa [#allocation8], 1

</llo_original>
